<compile_context>
chip_gen: v7x
topology: tpu7x:2x2x1
jax: 0.10.0
libtpu: 0.0.40
codegen_flags: <defaults>
</compile_context>

<pallas_src>
import math

import jax
import jax.numpy as jnp
from jax import lax
from jax.experimental import pallas as pl
from jax.experimental.pallas import tpu as pltpu


def _build_kernel(*, n_head, d_k, fused, return_attn, compute_dtype):
    D = n_head * d_k
    inv_sqrt_dk = 1.0 / math.sqrt(d_k)
    # Contract last dims of (TQ, d_k) x (S, d_k) -> (TQ, S); no transpose materialized.
    dn = (((1,), (1,)), ((), ()))

    def kernel(*refs):
        if fused:
            x_ref, wqkv_ref, bqkv_ref, wo_ref, bo_ref = refs[:5]
            outs = refs[5:]
        else:
            q_ref, k_ref, v_ref, wqkv_ref, bqkv_ref, wo_ref, bo_ref = refs[:7]
            outs = refs[7:]
        if return_attn:
            out_ref, attn_ref, ctx = outs
        else:
            (out_ref, ctx) = outs
            attn_ref = None

        wqkv = wqkv_ref[...].astype(compute_dtype)
        bqkv = bqkv_ref[...]

        if fused:
            # One wide (TQ, D) @ (D, 3D) MXU matmul for all three projections.
            x = x_ref[...].astype(compute_dtype)
            qkv = jnp.dot(x, wqkv, preferred_element_type=jnp.float32) + bqkv
            q = qkv[:, 0:D]
            k = qkv[:, D:2 * D]
            v = qkv[:, 2 * D:3 * D]
        else:
            q = jnp.dot(q_ref[...].astype(compute_dtype), wqkv[:, 0:D],
                        preferred_element_type=jnp.float32) + bqkv[:, 0:D]
            k = jnp.dot(k_ref[...].astype(compute_dtype), wqkv[:, D:2 * D],
                        preferred_element_type=jnp.float32) + bqkv[:, D:2 * D]
            v = jnp.dot(v_ref[...].astype(compute_dtype), wqkv[:, 2 * D:3 * D],
                        preferred_element_type=jnp.float32) + bqkv[:, 2 * D:3 * D]

        # Fold 1/sqrt(d_k) into q once (one (TQ, D) pass instead of n_head (TQ, S) passes).
        q = (q * inv_sqrt_dk).astype(compute_dtype)
        k = k.astype(compute_dtype)
        v = v.astype(compute_dtype)

        # Static loop over heads (n_head is a small compile-time constant).
        for h in range(n_head):
            lo, hi = h * d_k, (h + 1) * d_k
            scores = lax.dot_general(q[:, lo:hi], k[:, lo:hi], dn,
                                     preferred_element_type=jnp.float32)  # (TQ, S)
            m = jnp.max(scores, axis=-1, keepdims=True)
            e = jnp.exp(scores - m)
            denom = jnp.sum(e, axis=-1, keepdims=True)
            attn = e * pl.reciprocal(denom, approx=False)                  # (TQ, S) f32
            if attn_ref is not None:
                attn_ref[h, :, :] = attn.astype(attn_ref.dtype)
            ctx[:, lo:hi] = jnp.dot(attn.astype(compute_dtype), v[:, lo:hi],
                                    preferred_element_type=jnp.float32)

        out_ref[...] = (
            jnp.dot(ctx[...].astype(compute_dtype), wo_ref[...].astype(compute_dtype),
                    preferred_element_type=jnp.float32) + bo_ref[...]
        ).astype(out_ref.dtype)

    return kernel


def multi_head_attention(query, key, value, params, *, n_head,
                         return_attn=True,
                         compute_dtype=jnp.float32,
                         attn_dtype=jnp.float32,
                         block_q=None):
    """params: dict with wq,wk,wv,wo of shape (D, D) and bq,bk,bv,bo of shape (1, D).

    Returns (out, attn) if return_attn else out.
    """
    B, S, Dm = query.shape
    assert Dm % n_head == 0
    d_k = Dm // n_head

    # Query-dimension tile; default = full S (no tiling).
    if block_q is None or block_q <= 0 or S % block_q != 0:
        TQ = S
    else:
        TQ = block_q
    nq = S // TQ

    # Self-attention fast path: single fused QKV matmul (only valid when the q block
    # covers all rows, since the same block also supplies K and V).
    self_attn = (query is key) and (query is value)
    fused = self_attn and (TQ == S)

    # Host-side fusion of the three projection weights/biases: one DMA stream.
    wqkv = jnp.concatenate([params["wq"], params["wk"], params["wv"]], axis=1)  # (D, 3D)
    bqkv = jnp.concatenate([params["bq"], params["bk"], params["bv"]], axis=1)  # (1, 3D)
    wo, bo = params["wo"], params["bo"]

    kernel = _build_kernel(n_head=n_head, d_k=d_k, fused=fused,
                           return_attn=return_attn, compute_dtype=compute_dtype)

    q_spec = pl.BlockSpec((None, TQ, Dm), lambda b, i: (b, i, 0))
    kv_spec = pl.BlockSpec((None, S, Dm), lambda b, i: (b, 0, 0))
    wqkv_spec = pl.BlockSpec((Dm, 3 * Dm), lambda b, i: (0, 0))
    bqkv_spec = pl.BlockSpec((1, 3 * Dm), lambda b, i: (0, 0))
    wo_spec = pl.BlockSpec((Dm, Dm), lambda b, i: (0, 0))
    bo_spec = pl.BlockSpec((1, Dm), lambda b, i: (0, 0))

    if fused:
        in_specs = [q_spec, wqkv_spec, bqkv_spec, wo_spec, bo_spec]
        inputs = (query, wqkv, bqkv, wo, bo)
    else:
        in_specs = [q_spec, kv_spec, kv_spec, wqkv_spec, bqkv_spec, wo_spec, bo_spec]
        inputs = (query, key, value, wqkv, bqkv, wo, bo)

    out_shapes = [jax.ShapeDtypeStruct((B, S, Dm), query.dtype)]
    out_specs = [pl.BlockSpec((None, TQ, Dm), lambda b, i: (b, i, 0))]
    if return_attn:
        out_shapes.append(jax.ShapeDtypeStruct((B, n_head, S, S), attn_dtype))
        out_specs.append(pl.BlockSpec((None, n_head, TQ, S), lambda b, i: (b, 0, i, 0)))

    # Explicit VMEM budget: 2x-buffered blocks + scratch + headroom, capped.
    itemsize = query.dtype.itemsize
    attn_itemsize = jnp.dtype(attn_dtype).itemsize
    act_in = (TQ if fused else (TQ + 2 * S)) * Dm * itemsize
    w_bytes = (Dm * 3 * Dm + 3 * Dm + Dm * Dm + Dm) * 4
    out_bytes = TQ * Dm * itemsize
    if return_attn:
        out_bytes += n_head * TQ * S * attn_itemsize
    scratch_bytes = TQ * Dm * 4
    est = 2 * (act_in + w_bytes + out_bytes) + scratch_bytes + (16 << 20)
    vmem_limit = int(min(96 << 20, max(32 << 20, est)))

    results = pl.pallas_call(
        kernel,
        out_shape=out_shapes,
        grid_spec=pltpu.PrefetchScalarGridSpec(
            num_scalar_prefetch=0,
            grid=(B, nq),
            in_specs=in_specs,
            out_specs=out_specs,
            scratch_shapes=[pltpu.VMEM((TQ, Dm), jnp.float32)],
        ),
        compiler_params=pltpu.CompilerParams(
            dimension_semantics=("parallel", "parallel"),
            vmem_limit_bytes=vmem_limit,
        ),
    )(*inputs)

    out = results[0]
    if return_attn:
        return out, results[1]
    return out


def _reference(query, key, value, params, *, n_head):
    """Pure-JAX reference mirroring the PyTorch forward (mask=None, eval dropout)."""
    B, S, D = query.shape
    d_k = D // n_head

    def proj(x, w, b):
        return x @ w + b

    def to_heads(x):
        return x.reshape(B, S, n_head, d_k).transpose(0, 2, 1, 3)

    q = to_heads(proj(query, params["wq"], params["bq"]))
    k = to_heads(proj(key, params["wk"], params["bk"]))
    v = to_heads(proj(value, params["wv"], params["bv"]))

    scores = jnp.einsum("bhqd,bhkd->bhqk", q, k) / math.sqrt(d_k)
    attn = jax.nn.softmax(scores, axis=-1)
    x = jnp.einsum("bhqk,bhkd->bhqd", attn, v)
    x = x.transpose(0, 2, 1, 3).reshape(B, S, D)
    out = x @ params["wo"] + params["bo"]
    return out, attn


if __name__ == "__main__":
    B, S, d_model, n_head = 2, 8, 32, 4

    key0 = jax.random.PRNGKey(0)
    keys = jax.random.split(key0, 12)

    scale = 1.0 / math.sqrt(d_model)
    params = {
        "wq": jax.random.uniform(keys[0], (d_model, d_model), jnp.float32, -scale, scale),
        "wk": jax.random.uniform(keys[1], (d_model, d_model), jnp.float32, -scale, scale),
        "wv": jax.random.uniform(keys[2], (d_model, d_model), jnp.float32, -scale, scale),
        "wo": jax.random.uniform(keys[3], (d_model, d_model), jnp.float32, -scale, scale),
        "bq": jax.random.uniform(keys[4], (1, d_model), jnp.float32, -scale, scale),
        "bk": jax.random.uniform(keys[5], (1, d_model), jnp.float32, -scale, scale),
        "bv": jax.random.uniform(keys[6], (1, d_model), jnp.float32, -scale, scale),
        "bo": jax.random.uniform(keys[7], (1, d_model), jnp.float32, -scale, scale),
    }

    query = jax.random.normal(keys[8], (B, S, d_model), jnp.float32)
    key_ = jax.random.normal(keys[9], (B, S, d_model), jnp.float32)
    value = jax.random.normal(keys[10], (B, S, d_model), jnp.float32)

    # 1) General (cross) attention path, f32 compute, attn returned.
    out, attn = multi_head_attention(query, key_, value, params, n_head=n_head)
    out = jax.block_until_ready(out)
    attn = jax.block_until_ready(attn)
    ref_out, ref_attn = _reference(query, key_, value, params, n_head=n_head)
    assert out.shape == (B, S, d_model) and attn.shape == (B, n_head, S, S)
    assert jnp.allclose(out, ref_out, atol=1e-5, rtol=1e-5)
    assert jnp.allclose(attn, ref_attn, atol=1e-5, rtol=1e-5)

    # 2) Self-attention fast path (fused QKV matmul), f32 compute.
    out_s, attn_s = multi_head_attention(query, query, query, params, n_head=n_head)
    out_s = jax.block_until_ready(out_s)
    attn_s = jax.block_until_ready(attn_s)
    ref_out_s, ref_attn_s = _reference(query, query, query, params, n_head=n_head)
    assert jnp.allclose(out_s, ref_out_s, atol=1e-5, rtol=1e-5)
    assert jnp.allclose(attn_s, ref_attn_s, atol=1e-5, rtol=1e-5)

    # 3) bf16 MXU compute, attention probabilities not materialized (no O(S^2) writeback).
    out_b = multi_head_attention(query, query, query, params, n_head=n_head,
                                 return_attn=False, compute_dtype=jnp.bfloat16)
    out_b = jax.block_until_ready(out_b)
    assert jnp.allclose(out_b, ref_out_s, atol=5e-2, rtol=5e-2)

    print("KERNEL_OK")
</pallas_src>

<mosaic_0001>
module attributes {stable_mosaic.version = 11 : i64} {
  func.func @kernel(%arg0: i32, %arg1: i32, %arg2: memref<1x8x32xf32, #tpu.memory_space<vmem>>, %arg3: memref<1x8x32xf32, #tpu.memory_space<vmem>>, %arg4: memref<1x8x32xf32, #tpu.memory_space<vmem>>, %arg5: memref<32x96xf32, #tpu.memory_space<vmem>>, %arg6: memref<1x96xf32, #tpu.memory_space<vmem>>, %arg7: memref<32x32xf32, #tpu.memory_space<vmem>>, %arg8: memref<1x32xf32, #tpu.memory_space<vmem>>, %arg9: memref<1x8x32xf32, #tpu.memory_space<vmem>>, %arg10: memref<1x4x8x8xf32, #tpu.memory_space<vmem>>, %arg11: memref<8x32xf32, #tpu.memory_space<vmem>>) attributes {dimension_semantics = [#tpu.dimension_semantics<parallel>, #tpu.dimension_semantics<parallel>], iteration_bounds = array<i64: 2, 1>, scalar_prefetch = 0 : i64, scratch_operands = 1 : i64, tpu.core_type = #tpu.core_type<tc>, window_params = [{transform_indices = @transform_0, window_bounds = array<i64: 1, 8, 32>}, {transform_indices = @transform_1, window_bounds = array<i64: 1, 8, 32>}, {transform_indices = @transform_2, window_bounds = array<i64: 1, 8, 32>}, {pipeline_mode = #tpu.pipeline_mode<synchronous>, transform_indices = @transform_3, window_bounds = array<i64: 32, 96>}, {pipeline_mode = #tpu.pipeline_mode<synchronous>, transform_indices = @transform_4, window_bounds = array<i64: 1, 96>}, {pipeline_mode = #tpu.pipeline_mode<synchronous>, transform_indices = @transform_5, window_bounds = array<i64: 32, 32>}, {pipeline_mode = #tpu.pipeline_mode<synchronous>, transform_indices = @transform_6, window_bounds = array<i64: 1, 32>}, {transform_indices = @transform_7, window_bounds = array<i64: 1, 8, 32>}, {transform_indices = @transform_8, window_bounds = array<i64: 1, 4, 8, 8>}]} {
    %c0 = arith.constant 0 : index
    %c0_0 = arith.constant 0 : index
    %0 = vector.load %arg5[%c0, %c0_0] : memref<32x96xf32, #tpu.memory_space<vmem>>, vector<32x96xf32>
    %c0_1 = arith.constant 0 : index
    %c0_2 = arith.constant 0 : index
    %1 = vector.load %arg6[%c0_1, %c0_2] : memref<1x96xf32, #tpu.memory_space<vmem>>, vector<1x96xf32>
    %c0_3 = arith.constant 0 : index
    %c0_4 = arith.constant 0 : index
    %c0_5 = arith.constant 0 : index
    %2 = vector.load %arg2[%c0_3, %c0_4, %c0_5] : memref<1x8x32xf32, #tpu.memory_space<vmem>>, vector<1x8x32xf32>
    %3 = vector.shape_cast %2 : vector<1x8x32xf32> to vector<8x32xf32>
    %4 = vector.extract_strided_slice %0 {offsets = [0, 0], sizes = [32, 32], strides = [1, 1]} : vector<32x96xf32> to vector<32x32xf32>
    %cst = arith.constant dense<0.000000e+00> : vector<8x32xf32>
    %5 = tpu.matmul %3, %4, %cst {dimension_numbers = #tpu.dot_dimension_numbers<[1], [0], [0], [1], [0, 0, 1, 1], [], []>} : vector<8x32xf32>, vector<32x32xf32>, vector<8x32xf32> -> vector<8x32xf32>
    %6 = vector.extract_strided_slice %1 {offsets = [0, 0], sizes = [1, 32], strides = [1, 1]} : vector<1x96xf32> to vector<1x32xf32>
    %7 = vector.broadcast %6 : vector<1x32xf32> to vector<8x32xf32>
    %8 = arith.addf %5, %7 : vector<8x32xf32>
    %c0_6 = arith.constant 0 : index
    %c0_7 = arith.constant 0 : index
    %c0_8 = arith.constant 0 : index
    %9 = vector.load %arg3[%c0_6, %c0_7, %c0_8] : memref<1x8x32xf32, #tpu.memory_space<vmem>>, vector<1x8x32xf32>
    %10 = vector.shape_cast %9 : vector<1x8x32xf32> to vector<8x32xf32>
    %11 = vector.extract_strided_slice %0 {offsets = [0, 32], sizes = [32, 32], strides = [1, 1]} : vector<32x96xf32> to vector<32x32xf32>
    %cst_9 = arith.constant dense<0.000000e+00> : vector<8x32xf32>
    %12 = tpu.matmul %10, %11, %cst_9 {dimension_numbers = #tpu.dot_dimension_numbers<[1], [0], [0], [1], [0, 0, 1, 1], [], []>} : vector<8x32xf32>, vector<32x32xf32>, vector<8x32xf32> -> vector<8x32xf32>
    %13 = vector.extract_strided_slice %1 {offsets = [0, 32], sizes = [1, 32], strides = [1, 1]} : vector<1x96xf32> to vector<1x32xf32>
    %14 = vector.broadcast %13 : vector<1x32xf32> to vector<8x32xf32>
    %15 = arith.addf %12, %14 : vector<8x32xf32>
    %c0_10 = arith.constant 0 : index
    %c0_11 = arith.constant 0 : index
    %c0_12 = arith.constant 0 : index
    %16 = vector.load %arg4[%c0_10, %c0_11, %c0_12] : memref<1x8x32xf32, #tpu.memory_space<vmem>>, vector<1x8x32xf32>
    %17 = vector.shape_cast %16 : vector<1x8x32xf32> to vector<8x32xf32>
    %18 = vector.extract_strided_slice %0 {offsets = [0, 64], sizes = [32, 32], strides = [1, 1]} : vector<32x96xf32> to vector<32x32xf32>
    %cst_13 = arith.constant dense<0.000000e+00> : vector<8x32xf32>
    %19 = tpu.matmul %17, %18, %cst_13 {dimension_numbers = #tpu.dot_dimension_numbers<[1], [0], [0], [1], [0, 0, 1, 1], [], []>} : vector<8x32xf32>, vector<32x32xf32>, vector<8x32xf32> -> vector<8x32xf32>
    %20 = vector.extract_strided_slice %1 {offsets = [0, 64], sizes = [1, 32], strides = [1, 1]} : vector<1x96xf32> to vector<1x32xf32>
    %21 = vector.broadcast %20 : vector<1x32xf32> to vector<8x32xf32>
    %22 = arith.addf %19, %21 : vector<8x32xf32>
    %cst_14 = arith.constant 0.353553385 : f32
    %23 = vector.broadcast %cst_14 : f32 to vector<8x32xf32>
    %24 = arith.mulf %8, %23 : vector<8x32xf32>
    %25 = vector.extract_strided_slice %24 {offsets = [0, 0], sizes = [8, 8], strides = [1, 1]} : vector<8x32xf32> to vector<8x8xf32>
    %26 = vector.extract_strided_slice %15 {offsets = [0, 0], sizes = [8, 8], strides = [1, 1]} : vector<8x32xf32> to vector<8x8xf32>
    %cst_15 = arith.constant dense<0.000000e+00> : vector<8x8xf32>
    %27 = tpu.matmul %25, %26, %cst_15 {dimension_numbers = #tpu.dot_dimension_numbers<[1], [1], [0], [0], [0, 0, 1, 0], [], []>} : vector<8x8xf32>, vector<8x8xf32>, vector<8x8xf32> -> vector<8x8xf32>
    %cst_16 = arith.constant dense<0xFF800000> : vector<8xf32>
    %28 = vector.multi_reduction <maximumf>, %27, %cst_16 [1] : vector<8x8xf32> to vector<8xf32>
    %29 = vector.shape_cast %28 : vector<8xf32> to vector<8x1xf32>
    %30 = vector.broadcast %29 : vector<8x1xf32> to vector<8x8xf32>
    %31 = arith.subf %27, %30 : vector<8x8xf32>
    %32 = math.exp %31 : vector<8x8xf32>
    %cst_17 = arith.constant dense<0.000000e+00> : vector<8xf32>
    %33 = vector.multi_reduction <add>, %32, %cst_17 [1] : vector<8x8xf32> to vector<8xf32>
    %34 = vector.shape_cast %33 : vector<8xf32> to vector<8x1xf32>
    %35 = tpu.reciprocal %34 : vector<8x1xf32> -> vector<8x1xf32>
    %36 = vector.broadcast %35 : vector<8x1xf32> to vector<8x8xf32>
    %37 = arith.mulf %32, %36 : vector<8x8xf32>
    %c0_18 = arith.constant 0 : index
    %c0_19 = arith.constant 0 : index
    %c0_20 = arith.constant 0 : index
    %c0_21 = arith.constant 0 : index
    %38 = vector.load %arg10[%c0_18, %c0_19, %c0_20, %c0_21] : memref<1x4x8x8xf32, #tpu.memory_space<vmem>>, vector<1x1x8x8xf32>
    %39 = vector.shape_cast %38 : vector<1x1x8x8xf32> to vector<8x8xf32>
    %40 = vector.shape_cast %37 : vector<8x8xf32> to vector<1x1x8x8xf32>
    tpu.vector_store %arg10[%c0_18, %c0_19, %c0_20, %c0_21], %40 {strides = array<i32>} : memref<1x4x8x8xf32, #tpu.memory_space<vmem>>, vector<1x1x8x8xf32>,
    %41 = vector.extract_strided_slice %22 {offsets = [0, 0], sizes = [8, 8], strides = [1, 1]} : vector<8x32xf32> to vector<8x8xf32>
    %cst_22 = arith.constant dense<0.000000e+00> : vector<8x8xf32>
    %42 = tpu.matmul %37, %41, %cst_22 {dimension_numbers = #tpu.dot_dimension_numbers<[1], [0], [0], [1], [0, 0, 1, 1], [], []>} : vector<8x8xf32>, vector<8x8xf32>, vector<8x8xf32> -> vector<8x8xf32>
    %c0_23 = arith.constant 0 : index
    %c0_24 = arith.constant 0 : index
    %43 = vector.load %arg11[%c0_23, %c0_24] : memref<8x32xf32, #tpu.memory_space<vmem>>, vector<8x8xf32>
    tpu.vector_store %arg11[%c0_23, %c0_24], %42 {strides = array<i32>} : memref<8x32xf32, #tpu.memory_space<vmem>>, vector<8x8xf32>,
    %44 = vector.extract_strided_slice %24 {offsets = [0, 8], sizes = [8, 8], strides = [1, 1]} : vector<8x32xf32> to vector<8x8xf32>
    %45 = vector.extract_strided_slice %15 {offsets = [0, 8], sizes = [8, 8], strides = [1, 1]} : vector<8x32xf32> to vector<8x8xf32>
    %cst_25 = arith.constant dense<0.000000e+00> : vector<8x8xf32>
    %46 = tpu.matmul %44, %45, %cst_25 {dimension_numbers = #tpu.dot_dimension_numbers<[1], [1], [0], [0], [0, 0, 1, 0], [], []>} : vector<8x8xf32>, vector<8x8xf32>, vector<8x8xf32> -> vector<8x8xf32>
    %cst_26 = arith.constant dense<0xFF800000> : vector<8xf32>
    %47 = vector.multi_reduction <maximumf>, %46, %cst_26 [1] : vector<8x8xf32> to vector<8xf32>
    %48 = vector.shape_cast %47 : vector<8xf32> to vector<8x1xf32>
    %49 = vector.broadcast %48 : vector<8x1xf32> to vector<8x8xf32>
    %50 = arith.subf %46, %49 : vector<8x8xf32>
    %51 = math.exp %50 : vector<8x8xf32>
    %cst_27 = arith.constant dense<0.000000e+00> : vector<8xf32>
    %52 = vector.multi_reduction <add>, %51, %cst_27 [1] : vector<8x8xf32> to vector<8xf32>
    %53 = vector.shape_cast %52 : vector<8xf32> to vector<8x1xf32>
    %54 = tpu.reciprocal %53 : vector<8x1xf32> -> vector<8x1xf32>
    %55 = vector.broadcast %54 : vector<8x1xf32> to vector<8x8xf32>
    %56 = arith.mulf %51, %55 : vector<8x8xf32>
    %c0_28 = arith.constant 0 : index
    %c1 = arith.constant 1 : index
    %c0_29 = arith.constant 0 : index
    %c0_30 = arith.constant 0 : index
    %57 = vector.load %arg10[%c0_28, %c1, %c0_29, %c0_30] : memref<1x4x8x8xf32, #tpu.memory_space<vmem>>, vector<1x1x8x8xf32>
    %58 = vector.shape_cast %57 : vector<1x1x8x8xf32> to vector<8x8xf32>
    %59 = vector.shape_cast %56 : vector<8x8xf32> to vector<1x1x8x8xf32>
    tpu.vector_store %arg10[%c0_28, %c1, %c0_29, %c0_30], %59 {strides = array<i32>} : memref<1x4x8x8xf32, #tpu.memory_space<vmem>>, vector<1x1x8x8xf32>,
    %60 = vector.extract_strided_slice %22 {offsets = [0, 8], sizes = [8, 8], strides = [1, 1]} : vector<8x32xf32> to vector<8x8xf32>
    %cst_31 = arith.constant dense<0.000000e+00> : vector<8x8xf32>
    %61 = tpu.matmul %56, %60, %cst_31 {dimension_numbers = #tpu.dot_dimension_numbers<[1], [0], [0], [1], [0, 0, 1, 1], [], []>} : vector<8x8xf32>, vector<8x8xf32>, vector<8x8xf32> -> vector<8x8xf32>
    %c0_32 = arith.constant 0 : index
    %c8 = arith.constant 8 : index
    %62 = vector.load %arg11[%c0_32, %c8] : memref<8x32xf32, #tpu.memory_space<vmem>>, vector<8x8xf32>
    tpu.vector_store %arg11[%c0_32, %c8], %61 {strides = array<i32>} : memref<8x32xf32, #tpu.memory_space<vmem>>, vector<8x8xf32>,
    %63 = vector.extract_strided_slice %24 {offsets = [0, 16], sizes = [8, 8], strides = [1, 1]} : vector<8x32xf32> to vector<8x8xf32>
    %64 = vector.extract_strided_slice %15 {offsets = [0, 16], sizes = [8, 8], strides = [1, 1]} : vector<8x32xf32> to vector<8x8xf32>
    %cst_33 = arith.constant dense<0.000000e+00> : vector<8x8xf32>
    %65 = tpu.matmul %63, %64, %cst_33 {dimension_numbers = #tpu.dot_dimension_numbers<[1], [1], [0], [0], [0, 0, 1, 0], [], []>} : vector<8x8xf32>, vector<8x8xf32>, vector<8x8xf32> -> vector<8x8xf32>
    %cst_34 = arith.constant dense<0xFF800000> : vector<8xf32>
    %66 = vector.multi_reduction <maximumf>, %65, %cst_34 [1] : vector<8x8xf32> to vector<8xf32>
    %67 = vector.shape_cast %66 : vector<8xf32> to vector<8x1xf32>
    %68 = vector.broadcast %67 : vector<8x1xf32> to vector<8x8xf32>
    %69 = arith.subf %65, %68 : vector<8x8xf32>
    %70 = math.exp %69 : vector<8x8xf32>
    %cst_35 = arith.constant dense<0.000000e+00> : vector<8xf32>
    %71 = vector.multi_reduction <add>, %70, %cst_35 [1] : vector<8x8xf32> to vector<8xf32>
    %72 = vector.shape_cast %71 : vector<8xf32> to vector<8x1xf32>
    %73 = tpu.reciprocal %72 : vector<8x1xf32> -> vector<8x1xf32>
    %74 = vector.broadcast %73 : vector<8x1xf32> to vector<8x8xf32>
    %75 = arith.mulf %70, %74 : vector<8x8xf32>
    %c0_36 = arith.constant 0 : index
    %c2 = arith.constant 2 : index
    %c0_37 = arith.constant 0 : index
    %c0_38 = arith.constant 0 : index
    %76 = vector.load %arg10[%c0_36, %c2, %c0_37, %c0_38] : memref<1x4x8x8xf32, #tpu.memory_space<vmem>>, vector<1x1x8x8xf32>
    %77 = vector.shape_cast %76 : vector<1x1x8x8xf32> to vector<8x8xf32>
    %78 = vector.shape_cast %75 : vector<8x8xf32> to vector<1x1x8x8xf32>
    tpu.vector_store %arg10[%c0_36, %c2, %c0_37, %c0_38], %78 {strides = array<i32>} : memref<1x4x8x8xf32, #tpu.memory_space<vmem>>, vector<1x1x8x8xf32>,
    %79 = vector.extract_strided_slice %22 {offsets = [0, 16], sizes = [8, 8], strides = [1, 1]} : vector<8x32xf32> to vector<8x8xf32>
    %cst_39 = arith.constant dense<0.000000e+00> : vector<8x8xf32>
    %80 = tpu.matmul %75, %79, %cst_39 {dimension_numbers = #tpu.dot_dimension_numbers<[1], [0], [0], [1], [0, 0, 1, 1], [], []>} : vector<8x8xf32>, vector<8x8xf32>, vector<8x8xf32> -> vector<8x8xf32>
    %c0_40 = arith.constant 0 : index
    %c16 = arith.constant 16 : index
    %81 = vector.load %arg11[%c0_40, %c16] : memref<8x32xf32, #tpu.memory_space<vmem>>, vector<8x8xf32>
    tpu.vector_store %arg11[%c0_40, %c16], %80 {strides = array<i32>} : memref<8x32xf32, #tpu.memory_space<vmem>>, vector<8x8xf32>,
    %82 = vector.extract_strided_slice %24 {offsets = [0, 24], sizes = [8, 8], strides = [1, 1]} : vector<8x32xf32> to vector<8x8xf32>
    %83 = vector.extract_strided_slice %15 {offsets = [0, 24], sizes = [8, 8], strides = [1, 1]} : vector<8x32xf32> to vector<8x8xf32>
    %cst_41 = arith.constant dense<0.000000e+00> : vector<8x8xf32>
    %84 = tpu.matmul %82, %83, %cst_41 {dimension_numbers = #tpu.dot_dimension_numbers<[1], [1], [0], [0], [0, 0, 1, 0], [], []>} : vector<8x8xf32>, vector<8x8xf32>, vector<8x8xf32> -> vector<8x8xf32>
    %cst_42 = arith.constant dense<0xFF800000> : vector<8xf32>
    %85 = vector.multi_reduction <maximumf>, %84, %cst_42 [1] : vector<8x8xf32> to vector<8xf32>
    %86 = vector.shape_cast %85 : vector<8xf32> to vector<8x1xf32>
    %87 = vector.broadcast %86 : vector<8x1xf32> to vector<8x8xf32>
    %88 = arith.subf %84, %87 : vector<8x8xf32>
    %89 = math.exp %88 : vector<8x8xf32>
    %cst_43 = arith.constant dense<0.000000e+00> : vector<8xf32>
    %90 = vector.multi_reduction <add>, %89, %cst_43 [1] : vector<8x8xf32> to vector<8xf32>
    %91 = vector.shape_cast %90 : vector<8xf32> to vector<8x1xf32>
    %92 = tpu.reciprocal %91 : vector<8x1xf32> -> vector<8x1xf32>
    %93 = vector.broadcast %92 : vector<8x1xf32> to vector<8x8xf32>
    %94 = arith.mulf %89, %93 : vector<8x8xf32>
    %c0_44 = arith.constant 0 : index
    %c3 = arith.constant 3 : index
    %c0_45 = arith.constant 0 : index
    %c0_46 = arith.constant 0 : index
    %95 = vector.load %arg10[%c0_44, %c3, %c0_45, %c0_46] : memref<1x4x8x8xf32, #tpu.memory_space<vmem>>, vector<1x1x8x8xf32>
    %96 = vector.shape_cast %95 : vector<1x1x8x8xf32> to vector<8x8xf32>
    %97 = vector.shape_cast %94 : vector<8x8xf32> to vector<1x1x8x8xf32>
    tpu.vector_store %arg10[%c0_44, %c3, %c0_45, %c0_46], %97 {strides = array<i32>} : memref<1x4x8x8xf32, #tpu.memory_space<vmem>>, vector<1x1x8x8xf32>,
    %98 = vector.extract_strided_slice %22 {offsets = [0, 24], sizes = [8, 8], strides = [1, 1]} : vector<8x32xf32> to vector<8x8xf32>
    %cst_47 = arith.constant dense<0.000000e+00> : vector<8x8xf32>
    %99 = tpu.matmul %94, %98, %cst_47 {dimension_numbers = #tpu.dot_dimension_numbers<[1], [0], [0], [1], [0, 0, 1, 1], [], []>} : vector<8x8xf32>, vector<8x8xf32>, vector<8x8xf32> -> vector<8x8xf32>
    %c0_48 = arith.constant 0 : index
    %c24 = arith.constant 24 : index
    %100 = vector.load %arg11[%c0_48, %c24] : memref<8x32xf32, #tpu.memory_space<vmem>>, vector<8x8xf32>
    tpu.vector_store %arg11[%c0_48, %c24], %99 {strides = array<i32>} : memref<8x32xf32, #tpu.memory_space<vmem>>, vector<8x8xf32>,
    %c0_49 = arith.constant 0 : index
    %c0_50 = arith.constant 0 : index
    %101 = vector.load %arg11[%c0_49, %c0_50] : memref<8x32xf32, #tpu.memory_space<vmem>>, vector<8x32xf32>
    %c0_51 = arith.constant 0 : index
    %c0_52 = arith.constant 0 : index
    %102 = vector.load %arg7[%c0_51, %c0_52] : memref<32x32xf32, #tpu.memory_space<vmem>>, vector<32x32xf32>
    %cst_53 = arith.constant dense<0.000000e+00> : vector<8x32xf32>
    %103 = tpu.matmul %101, %102, %cst_53 {dimension_numbers = #tpu.dot_dimension_numbers<[1], [0], [0], [1], [0, 0, 1, 1], [], []>} : vector<8x32xf32>, vector<32x32xf32>, vector<8x32xf32> -> vector<8x32xf32>
    %c0_54 = arith.constant 0 : index
    %c0_55 = arith.constant 0 : index
    %104 = vector.load %arg8[%c0_54, %c0_55] : memref<1x32xf32, #tpu.memory_space<vmem>>, vector<1x32xf32>
    %105 = vector.broadcast %104 : vector<1x32xf32> to vector<8x32xf32>
    %106 = arith.addf %103, %105 : vector<8x32xf32>
    %c0_56 = arith.constant 0 : index
    %c0_57 = arith.constant 0 : index
    %c0_58 = arith.constant 0 : index
    %107 = vector.load %arg9[%c0_56, %c0_57, %c0_58] : memref<1x8x32xf32, #tpu.memory_space<vmem>>, vector<1x8x32xf32>
    %108 = vector.shape_cast %107 : vector<1x8x32xf32> to vector<8x32xf32>
    %109 = vector.shape_cast %106 : vector<8x32xf32> to vector<1x8x32xf32>
    tpu.vector_store %arg9[%c0_56, %c0_57, %c0_58], %109 {strides = array<i32>} : memref<1x8x32xf32, #tpu.memory_space<vmem>>, vector<1x8x32xf32>,
    return
  }
  func.func @transform_0(%arg0: i32, %arg1: i32) -> (i32, i32, i32) {
    %c0_i32 = arith.constant 0 : i32
    %c0_i32_0 = arith.constant 0 : i32
    return %arg0, %arg1, %c0_i32 : i32, i32, i32
  }
  func.func @transform_1(%arg0: i32, %arg1: i32) -> (i32, i32, i32) {
    %c0_i32 = arith.constant 0 : i32
    %c0_i32_0 = arith.constant 0 : i32
    %c0_i32_1 = arith.constant 0 : i32
    return %arg0, %c0_i32, %c0_i32_0 : i32, i32, i32
  }
  func.func @transform_2(%arg0: i32, %arg1: i32) -> (i32, i32, i32) {
    %c0_i32 = arith.constant 0 : i32
    %c0_i32_0 = arith.constant 0 : i32
    %c0_i32_1 = arith.constant 0 : i32
    return %arg0, %c0_i32, %c0_i32_0 : i32, i32, i32
  }
  func.func @transform_3(%arg0: i32, %arg1: i32) -> (i32, i32) {
    %c0_i32 = arith.constant 0 : i32
    %c0_i32_0 = arith.constant 0 : i32
    %c0_i32_1 = arith.constant 0 : i32
    return %c0_i32, %c0_i32_0 : i32, i32
  }
  func.func @transform_4(%arg0: i32, %arg1: i32) -> (i32, i32) {
    %c0_i32 = arith.constant 0 : i32
    %c0_i32_0 = arith.constant 0 : i32
    %c0_i32_1 = arith.constant 0 : i32
    return %c0_i32, %c0_i32_0 : i32, i32
  }
  func.func @transform_5(%arg0: i32, %arg1: i32) -> (i32, i32) {
    %c0_i32 = arith.constant 0 : i32
    %c0_i32_0 = arith.constant 0 : i32
    %c0_i32_1 = arith.constant 0 : i32
    return %c0_i32, %c0_i32_0 : i32, i32
  }
  func.func @transform_6(%arg0: i32, %arg1: i32) -> (i32, i32) {
    %c0_i32 = arith.constant 0 : i32
    %c0_i32_0 = arith.constant 0 : i32
    %c0_i32_1 = arith.constant 0 : i32
    return %c0_i32, %c0_i32_0 : i32, i32
  }
  func.func @transform_7(%arg0: i32, %arg1: i32) -> (i32, i32, i32) {
    %c0_i32 = arith.constant 0 : i32
    %c0_i32_0 = arith.constant 0 : i32
    return %arg0, %arg1, %c0_i32 : i32, i32, i32
  }
  func.func @transform_8(%arg0: i32, %arg1: i32) -> (i32, i32, i32, i32) {
    %c0_i32 = arith.constant 0 : i32
    %c0_i32_0 = arith.constant 0 : i32
    %c0_i32_1 = arith.constant 0 : i32
    return %arg0, %c0_i32, %arg1, %c0_i32_0 : i32, i32, i32, i32
  }
}

</mosaic_0001>

<llo_original>
// kernel: tpu_custom_call.1
$region0: #{tpu_custom_call.1}
  #allocation0 [shape = 'u32[]', space=smem, size = 0x4, offset = 0x4, fixed_abs, tag = 'smem constant byte address 0x4 - core index']
  #allocation1 [shape = 'u32[144,128]{1,0:T(1,128)}', space=vmem, size = 0x12000, scoped, tag = 'internal scratch']
  #allocation2 [shape = 'f32[8,32]{1,0:T(8,128)}', space=vmem, size = 0x1000, scoped, tag = 'scratch operand']
  %s0 = inlined_call_operand.hbm [shape: f32[2,8,32], index: 0, kind: input, shape index: {}]
  %s1 = inlined_call_operand.hbm [shape: f32[2,8,32], index: 1, kind: input, shape index: {}]
  %s2 = inlined_call_operand.hbm [shape: f32[2,8,32], index: 2, kind: input, shape index: {}]
  %s3 = inlined_call_operand.hbm [shape: f32[32,96], index: 3, kind: input, shape index: {}]
  %s4 = inlined_call_operand.vmem [shape: f32[1,96], index: 4, kind: input, shape index: {}]
  %s5 = inlined_call_operand.hbm [shape: f32[32,32], index: 5, kind: input, shape index: {}]
  %s6 = inlined_call_operand.vmem [shape: f32[1,32], index: 6, kind: input, shape index: {}]
  %s7 = inlined_call_operand.hbm [shape: f32[2,8,32], index: 7, kind: output, shape index: {0}]
  %s8 = inlined_call_operand.hbm [shape: f32[2,4,8,8], index: 8, kind: output, shape index: {1}]
  %9 = xla_tuple %s7, %s8
  %s10 = sld [smem:[#allocation0]]
  $region89: #{tpu_custom_call.1} parent=0
    _
  %s12 = ssub.s32 1, %s10
  %s13 = scalar_select 0, %s12, %s10
  $region1: #{tpu_custom_call.1} parent=0
    #allocation3 [shape = 'u8[8192]{0}', space=vmem, size = 0x2000, scoped, tag = 'input window, operand 0']
    #allocation4 [shape = 's32[2]{0}', space=sflag, size = 0x8, scoped, tag = 'scoped memory for tpu_custom_call.1']
    #allocation5 [shape = 's32[2]{0}', space=sflag, size = 0x8, scoped, tag = 'scoped memory for tpu_custom_call.1']
    #allocation6 [shape = 'u8[8192]{0}', space=vmem, size = 0x2000, scoped, tag = 'input window, operand 1']
    #allocation7 [shape = 's32[2]{0}', space=sflag, size = 0x8, scoped, tag = 'scoped memory for tpu_custom_call.1']
    #allocation8 [shape = 'u8[8192]{0}', space=vmem, size = 0x2000, scoped, tag = 'input window, operand 2']
    #allocation9 [shape = 'u8[16384]{0}', space=vmem, size = 0x4000, scoped, tag = 'input window, operand 3, single buffered']
    #allocation10 [shape = 's32[1]{0}', space=sflag, size = 0x4, scoped, tag = 'scoped memory for tpu_custom_call.1']
    #allocation11 [shape = 'u8[16384]{0}', space=vmem, size = 0x4000, scoped, tag = 'input window, operand 5, single buffered']
    #allocation12 [shape = 'u8[8192]{0}', space=vmem, size = 0x2000, scoped, tag = 'output window, operand 0']
    #allocation13 [shape = 'u8[32768]{0}', space=vmem, size = 0x8000, scoped, tag = 'output window, operand 1']
    #allocation14 [shape = 's32[2]{0}', space=sflag, size = 0x8, scoped, tag = 'scoped memory for tpu_custom_call.1']
    %14 = vsyncpa [#allocation4], 0
    %s15 = scalar_lea.sflag [#allocation4], 1
    %16 = vsyncpa %s15, 0
    %17 = vsyncpa [#allocation7], 0
    %s18 = scalar_lea.sflag [#allocation7], 1
    %19 = vsyncpa %s18, 0
    %20 = vsyncpa [#allocation10], 0
    %21 = vsyncpa [#allocation5], 0
    %s22 = scalar_lea.sflag [#allocation5], 1
    %23 = vsyncpa %s22, 0
    %24 = vsyncpa [#allocation14], 0
    %s25 = scalar_lea.sflag [#allocation14], 1
    %26 = vsyncpa %s25, 0
    loop: start=0, step=1, limit=4
    $region2: #{tpu_custom_call.1} parent=1 // loop_pre_header
      _
    $region3: #{tpu_custom_call.1} parent=1 // loop_header
      %s28 = sphi 0, %s32
      %p29 = scmp.ge.s32.totalorder %s28, 4
      %s35 = sphi 0, %s47
      %s36 = sphi 0, %s43
      %s37 = sphi 0, %s35
      %s38 = sphi 0, %s36
      %s39 = sphi 0, %s37
      %s40 = sphi 0, %s38
      %s52 = sphi 0, %s54
      %s55 = sphi 0, %s52
      %s56 = sphi 0, %s55
      %s72 = sphi 0, %s56
      %s78 = sphi 0, %s80
      %s81 = sphi 0, %s78
      %s82 = sphi 0, %s81
      %s98 = sphi 0, %s82
      %s104 = sphi 0, %s106
      %s107 = sphi 0, %s104
      %s108 = sphi 0, %s107
      %s124 = sphi 0, %s108
      %s128 = sphi 0, %s128
      %s130 = sphi 0, %s128
      %s131 = sphi 0, %s130
      %s145 = sphi 0, %s131
      %s149 = sphi 0, %s149
      %s151 = sphi 0, %s149
      %s152 = sphi 0, %s151
      %s166 = sphi 0, %s152
      %s170 = sphi 0, %s170
      %s172 = sphi 0, %s170
      %s173 = sphi 0, %s172
      %s187 = sphi 0, %s173
      %s191 = sphi 0, %s191
      %s193 = sphi 0, %s191
      %s194 = sphi 0, %s193
      %s208 = sphi 0, %s194
      %s216 = sphi 0, %s218
      %s219 = sphi 0, %s216
      %s220 = sphi 0, %s219
      %s236 = sphi 0, %s220
      %s244 = sphi 0, %s246
      %s247 = sphi 0, %s244
      %s248 = sphi 0, %s247
      %s264 = sphi 0, %s248
    $region4: #{tpu_custom_call.1} parent=1 // loop_header_branch
      %31 = sbr.rel (%p29) target = $region8
    $region5: #{tpu_custom_call.1} parent=1 // loop_body
      %s33 = ssub.s32 %s28, 1
      %s34 = ssub.s32 %s28, 2
      %s41 = sadd.s32 1, %s36
      %p42 = scmp.ge.s32.totalorder %s41, 1
      %s43 = scalar_select %p42, 0, %s41
      %s44 = sadd.s32 1, %s35
      %s45 = scalar_select %p42, %s44, %s35
      %p46 = scmp.ge.s32.totalorder %s45, 2
      %s47 = scalar_select %p46, 0, %s45
      %s48 = ssub.s32 %s35, %s47
      %s49 = ssub.s32 %s36, %s43
      %s50 = sor.u32 %s48, %s49
      %p51 = scmp.eq.s32.totalorder %s50, 0
      %s53 = sadd.s32 %s52, 1
      %s54 = scalar_select %p51, %s52, %s53
      %p57 = pneg %p51
      %p58 = scmp.eq.s32.totalorder %s28, 1
      %p59 = por %p57, %p58
      %p60 = scmp.ne.s32.totalorder %s52, %s55
      %p61 = scmp.eq.s32.totalorder %s28, 0
      %p62 = por %p60, %p61
      %p63 = scmp.ne.s32.totalorder %s52, %s55
      %p64 = scmp.eq.s32.totalorder %s33, 1
      %p65 = por %p63, %p64
      %p66 = scmp.ne.s32.totalorder %s55, %s56
      %p67 = scmp.eq.s32.totalorder %s33, 0
      %p68 = por %p66, %p67
      %p69 = scmp.ne.s32.totalorder %s55, %s56
      %p70 = scmp.eq.s32.totalorder %s34, 1
      %p71 = por %p69, %p70
      %p73 = scmp.ne.s32.totalorder %s56, %s72
      %p74 = scmp.eq.s32.totalorder %s34, 0
      %p75 = por %p73, %p74
      %s76 = ssub.s32 %s35, %s47
      %p77 = scmp.eq.s32.totalorder %s76, 0
      %s79 = sadd.s32 %s78, 1
      %s80 = scalar_select %p77, %s78, %s79
      %p83 = pneg %p77
      %p84 = scmp.eq.s32.totalorder %s28, 1
      %p85 = por %p83, %p84
      %p86 = scmp.ne.s32.totalorder %s78, %s81
      %p87 = scmp.eq.s32.totalorder %s28, 0
      %p88 = por %p86, %p87
      %p89 = scmp.ne.s32.totalorder %s78, %s81
      %p90 = scmp.eq.s32.totalorder %s33, 1
      %p91 = por %p89, %p90
      %p92 = scmp.ne.s32.totalorder %s81, %s82
      %p93 = scmp.eq.s32.totalorder %s33, 0
      %p94 = por %p92, %p93
      %p95 = scmp.ne.s32.totalorder %s81, %s82
      %p96 = scmp.eq.s32.totalorder %s34, 1
      %p97 = por %p95, %p96
      %p99 = scmp.ne.s32.totalorder %s82, %s98
      %p100 = scmp.eq.s32.totalorder %s34, 0
      %p101 = por %p99, %p100
      %s102 = ssub.s32 %s35, %s47
      %p103 = scmp.eq.s32.totalorder %s102, 0
      %s105 = sadd.s32 %s104, 1
      %s106 = scalar_select %p103, %s104, %s105
      %p109 = pneg %p103
      %p110 = scmp.eq.s32.totalorder %s28, 1
      %p111 = por %p109, %p110
      %p112 = scmp.ne.s32.totalorder %s104, %s107
      %p113 = scmp.eq.s32.totalorder %s28, 0
      %p114 = por %p112, %p113
      %p115 = scmp.ne.s32.totalorder %s104, %s107
      %p116 = scmp.eq.s32.totalorder %s33, 1
      %p117 = por %p115, %p116
      %p118 = scmp.ne.s32.totalorder %s107, %s108
      %p119 = scmp.eq.s32.totalorder %s33, 0
      %p120 = por %p118, %p119
      %p121 = scmp.ne.s32.totalorder %s107, %s108
      %p122 = scmp.eq.s32.totalorder %s34, 1
      %p123 = por %p121, %p122
      %p125 = scmp.ne.s32.totalorder %s108, %s124
      %p126 = scmp.eq.s32.totalorder %s34, 0
      %p127 = por %p125, %p126
      %s129 = sadd.s32 %s128, 1
      %p132 = scmp.eq.s32.totalorder %s28, 1
      %p133 = scmp.ne.s32.totalorder %s128, %s130
      %p134 = scmp.eq.s32.totalorder %s28, 0
      %p135 = por %p133, %p134
      %p136 = scmp.ne.s32.totalorder %s128, %s130
      %p137 = scmp.eq.s32.totalorder %s33, 1
      %p138 = por %p136, %p137
      %p139 = scmp.ne.s32.totalorder %s130, %s131
      %p140 = scmp.eq.s32.totalorder %s33, 0
      %p141 = por %p139, %p140
      %p142 = scmp.ne.s32.totalorder %s130, %s131
      %p143 = scmp.eq.s32.totalorder %s34, 1
      %p144 = por %p142, %p143
      %p146 = scmp.ne.s32.totalorder %s131, %s145
      %p147 = scmp.eq.s32.totalorder %s34, 0
      %p148 = por %p146, %p147
      %s150 = sadd.s32 %s149, 1
      %p153 = scmp.eq.s32.totalorder %s28, 1
      %p154 = scmp.ne.s32.totalorder %s149, %s151
      %p155 = scmp.eq.s32.totalorder %s28, 0
      %p156 = por %p154, %p155
      %p157 = scmp.ne.s32.totalorder %s149, %s151
      %p158 = scmp.eq.s32.totalorder %s33, 1
      %p159 = por %p157, %p158
      %p160 = scmp.ne.s32.totalorder %s151, %s152
      %p161 = scmp.eq.s32.totalorder %s33, 0
      %p162 = por %p160, %p161
      %p163 = scmp.ne.s32.totalorder %s151, %s152
      %p164 = scmp.eq.s32.totalorder %s34, 1
      %p165 = por %p163, %p164
      %p167 = scmp.ne.s32.totalorder %s152, %s166
      %p168 = scmp.eq.s32.totalorder %s34, 0
      %p169 = por %p167, %p168
      %s171 = sadd.s32 %s170, 1
      %p174 = scmp.eq.s32.totalorder %s28, 1
      %p175 = scmp.ne.s32.totalorder %s170, %s172
      %p176 = scmp.eq.s32.totalorder %s28, 0
      %p177 = por %p175, %p176
      %p178 = scmp.ne.s32.totalorder %s170, %s172
      %p179 = scmp.eq.s32.totalorder %s33, 1
      %p180 = por %p178, %p179
      %p181 = scmp.ne.s32.totalorder %s172, %s173
      %p182 = scmp.eq.s32.totalorder %s33, 0
      %p183 = por %p181, %p182
      %p184 = scmp.ne.s32.totalorder %s172, %s173
      %p185 = scmp.eq.s32.totalorder %s34, 1
      %p186 = por %p184, %p185
      %p188 = scmp.ne.s32.totalorder %s173, %s187
      %p189 = scmp.eq.s32.totalorder %s34, 0
      %p190 = por %p188, %p189
      %s192 = sadd.s32 %s191, 1
      %p195 = scmp.eq.s32.totalorder %s28, 1
      %p196 = scmp.ne.s32.totalorder %s191, %s193
      %p197 = scmp.eq.s32.totalorder %s28, 0
      %p198 = por %p196, %p197
      %p199 = scmp.ne.s32.totalorder %s191, %s193
      %p200 = scmp.eq.s32.totalorder %s33, 1
      %p201 = por %p199, %p200
      %p202 = scmp.ne.s32.totalorder %s193, %s194
      %p203 = scmp.eq.s32.totalorder %s33, 0
      %p204 = por %p202, %p203
      %p205 = scmp.ne.s32.totalorder %s193, %s194
      %p206 = scmp.eq.s32.totalorder %s34, 1
      %p207 = por %p205, %p206
      %p209 = scmp.ne.s32.totalorder %s194, %s208
      %p210 = scmp.eq.s32.totalorder %s34, 0
      %p211 = por %p209, %p210
      %s212 = ssub.s32 %s35, %s47
      %s213 = ssub.s32 %s36, %s43
      %s214 = sor.u32 %s212, %s213
      %p215 = scmp.eq.s32.totalorder %s214, 0
      %s217 = sadd.s32 %s216, 1
      %s218 = scalar_select %p215, %s216, %s217
      %p221 = pneg %p215
      %p222 = scmp.eq.s32.totalorder %s28, 1
      %p223 = por %p221, %p222
      %p224 = scmp.ne.s32.totalorder %s216, %s219
      %p225 = scmp.eq.s32.totalorder %s28, 0
      %p226 = por %p224, %p225
      %p227 = scmp.ne.s32.totalorder %s216, %s219
      %p228 = scmp.eq.s32.totalorder %s33, 1
      %p229 = por %p227, %p228
      %p230 = scmp.ne.s32.totalorder %s219, %s220
      %p231 = scmp.eq.s32.totalorder %s33, 0
      %p232 = por %p230, %p231
      %p233 = scmp.ne.s32.totalorder %s219, %s220
      %p234 = scmp.eq.s32.totalorder %s34, 1
      %p235 = por %p233, %p234
      %p237 = scmp.ne.s32.totalorder %s220, %s236
      %p238 = scmp.eq.s32.totalorder %s34, 0
      %p239 = por %p237, %p238
      %s240 = ssub.s32 %s35, %s47
      %s241 = ssub.s32 %s36, %s43
      %s242 = sor.u32 %s240, %s241
      %p243 = scmp.eq.s32.totalorder %s242, 0
      %s245 = sadd.s32 %s244, 1
      %s246 = scalar_select %p243, %s244, %s245
      %p249 = pneg %p243
      %p250 = scmp.eq.s32.totalorder %s28, 1
      %p251 = por %p249, %p250
      %p252 = scmp.ne.s32.totalorder %s244, %s247
      %p253 = scmp.eq.s32.totalorder %s28, 0
      %p254 = por %p252, %p253
      %p255 = scmp.ne.s32.totalorder %s244, %s247
      %p256 = scmp.eq.s32.totalorder %s33, 1
      %p257 = por %p255, %p256
      %p258 = scmp.ne.s32.totalorder %s247, %s248
      %p259 = scmp.eq.s32.totalorder %s33, 0
      %p260 = por %p258, %p259
      %p261 = scmp.ne.s32.totalorder %s247, %s248
      %p262 = scmp.eq.s32.totalorder %s34, 1
      %p263 = por %p261, %p262
      %p265 = scmp.ne.s32.totalorder %s248, %s264
      %p266 = scmp.eq.s32.totalorder %s34, 0
      %p267 = por %p265, %p266
      %p268 = scmp.le.s32.totalorder 1, %s28
      %p269 = scmp.lt.s32.totalorder %s28, 3
      %p270 = pnand %p268, %p269
      %p271 = pneg %p270
      // Predicated region
      $region9: #{tpu_custom_call.1} parent=5 // pred_check
        _
      $region10: #{tpu_custom_call.1} parent=5 // pred_check_branch
        %273 = sbr.rel (%p270) target = $region12
      $region11: #{tpu_custom_call.1} parent=5 // pred_region
        %s274 = ssub.s32 %s28, 1
        // Predicated region
        $region13: #{tpu_custom_call.1} parent=11 // pred_check
          %p275 = pneg %p141
        $region14: #{tpu_custom_call.1} parent=11 // pred_check_branch
          %277 = sbr.rel (%p275) target = $region16
        $region15: #{tpu_custom_call.1} parent=11 // pred_region
          %s279 = ssub.s32 512, 512
          %280 = vsyncadd [#allocation10], %s279
          %s281 = sshll.u32 [#allocation9], 4
          %s282 = int_to_ptr.vmem [resolvable:$true] %s281
          %287 = dma.hbm_to_vmem [thread:$0]  %s3, 512, %s282, [#allocation10], 128, 128, 8
        $region16: #{tpu_custom_call.1} parent=11 // pred_fallthru
          _
        // Predicated region
        $region17: #{tpu_custom_call.1} parent=11 // pred_check
          %p288 = pneg %p162
        $region18: #{tpu_custom_call.1} parent=11 // pred_check_branch
          %290 = sbr.rel (%p288) target = $region20
        $region19: #{tpu_custom_call.1} parent=11 // pred_region
          _
        $region20: #{tpu_custom_call.1} parent=11 // pred_fallthru
          _
        // Predicated region
        $region21: #{tpu_custom_call.1} parent=11 // pred_check
          %p291 = pneg %p183
        $region22: #{tpu_custom_call.1} parent=11 // pred_check_branch
          %293 = sbr.rel (%p291) target = $region24
        $region23: #{tpu_custom_call.1} parent=11 // pred_region
          %s295 = ssub.s32 512, 512
          %296 = vsyncadd [#allocation10], %s295
          %s297 = sshll.u32 [#allocation11], 4
          %s298 = int_to_ptr.vmem [resolvable:$true] %s297
          %303 = dma.hbm_to_vmem [thread:$0]  %s5, 512, %s298, [#allocation10], 128, 128, 8
        $region24: #{tpu_custom_call.1} parent=11 // pred_fallthru
          _
        // Predicated region
        $region25: #{tpu_custom_call.1} parent=11 // pred_check
          %p304 = pneg %p204
        $region26: #{tpu_custom_call.1} parent=11 // pred_check_branch
          %306 = sbr.rel (%p304) target = $region28
        $region27: #{tpu_custom_call.1} parent=11 // pred_region
          _
        $region28: #{tpu_custom_call.1} parent=11 // pred_fallthru
          _
      $region12: #{tpu_custom_call.1} parent=5 // pred_fallthru
        _
      %p307 = scmp.lt.s32.totalorder %s28, 2
      // Predicated region
      $region29: #{tpu_custom_call.1} parent=5 // pred_check
        %p308 = pneg %p307
      $region30: #{tpu_custom_call.1} parent=5 // pred_check_branch
        %310 = sbr.rel (%p308) target = $region32
      $region31: #{tpu_custom_call.1} parent=5 // pred_region
        // Predicated region
        $region33: #{tpu_custom_call.1} parent=31 // pred_check
          %p311 = pneg %p62
        $region34: #{tpu_custom_call.1} parent=31 // pred_check_branch
          %313 = sbr.rel (%p311) target = $region36
        $region35: #{tpu_custom_call.1} parent=31 // pred_region
          %s314 = sand.u32 %s52, 1
          %s315 = scalar_lea.sflag [#allocation4], %s314
          %s316 = sand.u32 %s52, 1
          %s317 = smul.addr %s316, 8
          %s318 = scalar_lea.vmem [#allocation3], %s317
          %s320 = ssub.s32 128, 128
          %321 = vsyncadd %s315, %s320
          %s322 = sadd.s32 %s36, %s35
          %s323 = smul.addr %s322, 128
          %s324 = scalar_lea.hbm %s0, %s323
          %s326 = sshll.u32 %s318, 4
          %s327 = int_to_ptr.vmem [resolvable:$true] %s326
          %329 = dma.hbm_to_vmem [thread:$0]  %s324, 128, %s327, %s315
        $region36: #{tpu_custom_call.1} parent=31 // pred_fallthru
          _
        // Predicated region
        $region37: #{tpu_custom_call.1} parent=31 // pred_check
          %p330 = pneg %p88
        $region38: #{tpu_custom_call.1} parent=31 // pred_check_branch
          %332 = sbr.rel (%p330) target = $region40
        $region39: #{tpu_custom_call.1} parent=31 // pred_region
          %s333 = sand.u32 %s28, 1
          %s334 = scalar_lea.sflag [#allocation7], %s333
          %s335 = sand.u32 %s78, 1
          %s336 = smul.addr %s335, 8
          %s337 = scalar_lea.vmem [#allocation6], %s336
          %s339 = ssub.s32 128, 128
          %340 = vsyncadd %s334, %s339
          %s341 = smul.addr %s35, 128
          %s342 = scalar_lea.hbm %s1, %s341
          %s344 = sshll.u32 %s337, 4
          %s345 = int_to_ptr.vmem [resolvable:$true] %s344
          %347 = dma.hbm_to_vmem [thread:$0]  %s342, 128, %s345, %s334
        $region40: #{tpu_custom_call.1} parent=31 // pred_fallthru
          _
        // Predicated region
        $region41: #{tpu_custom_call.1} parent=31 // pred_check
          %p348 = pneg %p114
        $region42: #{tpu_custom_call.1} parent=31 // pred_check_branch
          %350 = sbr.rel (%p348) target = $region44
        $region43: #{tpu_custom_call.1} parent=31 // pred_region
          %s351 = sand.u32 %s28, 1
          %s352 = scalar_lea.sflag [#allocation7], %s351
          %s353 = sand.u32 %s104, 1
          %s354 = smul.addr %s353, 8
          %s355 = scalar_lea.vmem [#allocation8], %s354
          %s357 = ssub.s32 128, 128
          %358 = vsyncadd %s352, %s357
          %s359 = smul.addr %s35, 128
          %s360 = scalar_lea.hbm %s2, %s359
          %s362 = sshll.u32 %s355, 4
          %s363 = int_to_ptr.vmem [resolvable:$true] %s362
          %365 = dma.hbm_to_vmem [thread:$0]  %s360, 128, %s363, %s352
        $region44: #{tpu_custom_call.1} parent=31 // pred_fallthru
          _
      $region32: #{tpu_custom_call.1} parent=5 // pred_fallthru
        _
      %p366 = scmp.le.s32.totalorder 1, %s28
      %p367 = scmp.lt.s32.totalorder %s28, 3
      %p368 = pnand %p366, %p367
      %p369 = pneg %p368
      // Predicated region
      $region45: #{tpu_custom_call.1} parent=5 // pred_check
        _
      $region46: #{tpu_custom_call.1} parent=5 // pred_check_branch
        %371 = sbr.rel (%p368) target = $region48
      $region47: #{tpu_custom_call.1} parent=5 // pred_region
        %s372 = ssub.s32 %s28, 1
        %s373 = sand.u32 %s55, 1
        %s374 = scalar_lea.sflag [#allocation4], %s373
        %s375 = sand.u32 %s55, 1
        %s376 = smul.addr %s375, 8
        %s377 = scalar_lea.vmem [#allocation3], %s376
        // Predicated region
        $region49: #{tpu_custom_call.1} parent=47 // pred_check
          %p378 = pneg %p68
        $region50: #{tpu_custom_call.1} parent=47 // pred_check_branch
          %380 = sbr.rel (%p378) target = $region52
        $region51: #{tpu_custom_call.1} parent=47 // pred_region
          %381 = dma.done %s374, 128
        $region52: #{tpu_custom_call.1} parent=47 // pred_fallthru
          _
        %s382 = sand.u32 %s33, 1
        %s383 = scalar_lea.sflag [#allocation7], %s382
        %s384 = sand.u32 %s81, 1
        %s385 = smul.addr %s384, 8
        %s386 = scalar_lea.vmem [#allocation6], %s385
        // Predicated region
        $region53: #{tpu_custom_call.1} parent=47 // pred_check
          %p387 = pneg %p94
        $region54: #{tpu_custom_call.1} parent=47 // pred_check_branch
          %389 = sbr.rel (%p387) target = $region56
        $region55: #{tpu_custom_call.1} parent=47 // pred_region
          %390 = dma.done %s383, 128
        $region56: #{tpu_custom_call.1} parent=47 // pred_fallthru
          _
        %s391 = sand.u32 %s33, 1
        %s392 = scalar_lea.sflag [#allocation7], %s391
        %s393 = sand.u32 %s107, 1
        %s394 = smul.addr %s393, 8
        %s395 = scalar_lea.vmem [#allocation8], %s394
        // Predicated region
        $region57: #{tpu_custom_call.1} parent=47 // pred_check
          %p396 = pneg %p120
        $region58: #{tpu_custom_call.1} parent=47 // pred_check_branch
          %398 = sbr.rel (%p396) target = $region60
        $region59: #{tpu_custom_call.1} parent=47 // pred_region
          %399 = dma.done %s392, 128
        $region60: #{tpu_custom_call.1} parent=47 // pred_fallthru
          _
        // Predicated region
        $region61: #{tpu_custom_call.1} parent=47 // pred_check
          %p400 = pneg %p141
        $region62: #{tpu_custom_call.1} parent=47 // pred_check_branch
          %402 = sbr.rel (%p400) target = $region64
        $region63: #{tpu_custom_call.1} parent=47 // pred_region
          %403 = dma.done [#allocation10], 512
        $region64: #{tpu_custom_call.1} parent=47 // pred_fallthru
          _
        // Predicated region
        $region65: #{tpu_custom_call.1} parent=47 // pred_check
          %p404 = pneg %p183
        $region66: #{tpu_custom_call.1} parent=47 // pred_check_branch
          %406 = sbr.rel (%p404) target = $region68
        $region67: #{tpu_custom_call.1} parent=47 // pred_region
          %407 = dma.done [#allocation10], 512
        $region68: #{tpu_custom_call.1} parent=47 // pred_fallthru
          _
        %s408 = sand.u32 %s55, 1
        %s409 = scalar_lea.sflag [#allocation4], %s408
        %s410 = sand.u32 %s55, 1
        %s411 = smul.addr %s410, 8
        %s412 = scalar_lea.vmem [#allocation3], %s411
        %p413 = pneg %p68
        %p414 = pneg %p65
        %s415 = sand.u32 %s33, 1
        %s416 = scalar_lea.sflag [#allocation7], %s415
        %s417 = sand.u32 %s81, 1
        %s418 = smul.addr %s417, 8
        %s419 = scalar_lea.vmem [#allocation6], %s418
        %p420 = pneg %p94
        %p421 = pneg %p91
        %s422 = sand.u32 %s33, 1
        %s423 = scalar_lea.sflag [#allocation7], %s422
        %s424 = sand.u32 %s107, 1
        %s425 = smul.addr %s424, 8
        %s426 = scalar_lea.vmem [#allocation8], %s425
        %p427 = pneg %p120
        %p428 = pneg %p117
        %p429 = pneg %p141
        %p430 = pneg %p138
        %p431 = pneg %p162
        %p432 = pneg %p159
        %p433 = pneg %p183
        %p434 = pneg %p180
        %p435 = pneg %p204
        %p436 = pneg %p201
        %p437 = pneg %p232
        %p438 = pneg %p229
        %s439 = sand.u32 %s219, 1
        %s440 = scalar_lea.sflag [#allocation5], %s439
        %s441 = sand.u32 %s219, 1
        %s442 = smul.addr %s441, 8
        %s443 = scalar_lea.vmem [#allocation12], %s442
        %p444 = pneg %p260
        %p445 = pneg %p257
        %s446 = sand.u32 %s247, 1
        %s447 = scalar_lea.sflag [#allocation14], %s446
        %s448 = sand.u32 %s247, 1
        %s449 = smul.addr %s448, 32
        %s450 = scalar_lea.vmem [#allocation13], %s449
        %v451 = vld [vmem:[#allocation9] sm:$0xff]
        %v452 = vld [vmem:[#allocation9 + $0x8] sm:$0xff]
        %v453 = vld [vmem:[#allocation9 + $0x10] sm:$0xff]
        %v454 = vld [vmem:[#allocation9 + $0x18] sm:$0xff]
        %v455 = vld [vmem:[%s4] sm:$0x1]
        %v456 = vld [vmem:[%s377] sm:$0xff]
        %v458 = vlaneseq
        %v459 = vshrl.u32 %v458, 7
        %v460 = vsub.s32 0, %v459
        %v461 = vrot.slane %v455, %v460
        %vm463 = vcmask 261120
        %v465 = vsel %vm463, %v456, 0
        %467 = vmatprep.subr.mxu0 0.0
        %468 = vmatpush1.msra.mxu0 %v451
        %469 = vmatprep.subr.mxu0 0.0
        %470 = vmatpush1.msra.mxu0 %v452
        %471 = vmatprep.subr.mxu0 0.0
        %472 = vmatpush1.msra.mxu0 %v453
        %473 = vmatprep.subr.mxu0 0.0
        %474 = vmatpush1.msra.mxu0 %v454
        %475 = vmatprep.subr.mxu0 0.0
        %476 = vmatpush1.msra.mxu0 0.0
        %477 = vmatprep.subr.mxu0 0.0
        %478 = vmatpush1.msra.mxu0 0.0
        %479 = vmatprep.subr.mxu0 0.0
        %480 = vmatpush1.msra.mxu0 0.0
        %481 = vmatprep.subr.mxu0 0.0
        %482 = vmatpush1.msra.mxu0 0.0
        %483 = vmatprep.subr.mxu0 0.0
        %484 = vmatpush1.msra.mxu0 0.0
        %485 = vmatprep.subr.mxu0 0.0
        %486 = vmatpush1.msra.mxu0 0.0
        %487 = vmatprep.subr.mxu0 0.0
        %488 = vmatpush1.msra.mxu0 0.0
        %489 = vmatprep.subr.mxu0 0.0
        %490 = vmatpush1.msra.mxu0 0.0
        %491 = vmatprep.subr.mxu0 0.0
        %492 = vmatpush1.msra.mxu0 0.0
        %493 = vmatprep.subr.mxu0 0.0
        %494 = vmatpush1.msra.mxu0 0.0
        %495 = vmatprep.subr.mxu0 0.0
        %496 = vmatpush1.msra.mxu0 0.0
        %497 = vmatprep.subr.mxu0 0.0
        %498 = vmatpush1.msra.mxu0 0.0
        %499 = vmatprep.subr.mxu0 0.0
        %500 = vmatpush1.msra.mxu0 0.0
        %501 = vmatprep.subr.mxu0 0.0
        %502 = vmatpush1.msra.mxu0 0.0
        %503 = vmatprep.subr.mxu0 0.0
        %504 = vmatpush1.msra.mxu0 0.0
        %505 = vmatprep.subr.mxu0 0.0
        %506 = vmatpush1.msra.mxu0 0.0
        %507 = vmatprep.subr.mxu0 0.0
        %508 = vmatpush1.msra.mxu0 0.0
        %509 = vmatprep.subr.mxu0 0.0
        %510 = vmatpush1.msra.mxu0 0.0
        %511 = vmatprep.subr.mxu0 0.0
        %512 = vmatpush1.msra.mxu0 0.0
        %513 = vmatprep.subr.mxu0 0.0
        %514 = vmatpush1.msra.mxu0 0.0
        %515 = vmatprep.subr.mxu0 0.0
        %516 = vmatpush1.msra.mxu0 0.0
        %517 = vmatprep.subr.mxu0 0.0
        %518 = vmatpush1.msra.mxu0 0.0
        %519 = vmatprep.subr.mxu0 0.0
        %520 = vmatpush1.msra.mxu0 0.0
        %521 = vmatprep.subr.mxu0 0.0
        %522 = vmatpush1.msra.mxu0 0.0
        %523 = vmatprep.subr.mxu0 0.0
        %524 = vmatpush1.msra.mxu0 0.0
        %525 = vmatprep.subr.mxu0 0.0
        %526 = vmatpush1.msra.mxu0 0.0
        %527 = vmatprep.subr.mxu0 0.0
        %528 = vmatpush1.msra.mxu0 0.0
        %529 = vmatprep.subr.mxu0 0.0
        %530 = vmatpush1.msra.mxu0 0.0
        %531 = vmatprep.mubr.f32.mxu0 0.0
        %532 = vmatmul.mubr.f32.gmra.mrb[0].mxu0 %v465
        %v533 = vpop.f32.mrb[0].mxu0
        %v534 = vadd.f32 %v461, %v533
        %v535 = vpop.f32.mrb[0].mxu0
        %536 = vdwg.mxu0
        %v537 = vld [vmem:[%s386] sm:$0xff]
        %542 = vrot.lane.b32.xlu0 %v451, 96
        %v543 = vpop.permute.xlu0 %542
        %544 = vrot.lane.b32.xlu0 %v452, 96
        %v545 = vpop.permute.xlu0 %544
        %546 = vrot.lane.b32.xlu0 %v453, 96
        %v547 = vpop.permute.xlu0 %546
        %548 = vrot.lane.b32.xlu0 %v454, 96
        %v549 = vpop.permute.xlu0 %548
        %554 = vrot.lane.b32.xlu0 %v461, 96
        %v555 = vpop.permute.xlu0 %554
        %v558 = vsel %vm463, %v537, 0
        %560 = vmatprep.subr.mxu0 0.0
        %561 = vmatpush1.msra.mxu0 %v543
        %562 = vmatprep.subr.mxu0 0.0
        %563 = vmatpush1.msra.mxu0 %v545
        %564 = vmatprep.subr.mxu0 0.0
        %565 = vmatpush1.msra.mxu0 %v547
        %566 = vmatprep.subr.mxu0 0.0
        %567 = vmatpush1.msra.mxu0 %v549
        %568 = vmatprep.subr.mxu0 0.0
        %569 = vmatpush1.msra.mxu0 0.0
        %570 = vmatprep.subr.mxu0 0.0
        %571 = vmatpush1.msra.mxu0 0.0
        %572 = vmatprep.subr.mxu0 0.0
        %573 = vmatpush1.msra.mxu0 0.0
        %574 = vmatprep.subr.mxu0 0.0
        %575 = vmatpush1.msra.mxu0 0.0
        %576 = vmatprep.subr.mxu0 0.0
        %577 = vmatpush1.msra.mxu0 0.0
        %578 = vmatprep.subr.mxu0 0.0
        %579 = vmatpush1.msra.mxu0 0.0
        %580 = vmatprep.subr.mxu0 0.0
        %581 = vmatpush1.msra.mxu0 0.0
        %582 = vmatprep.subr.mxu0 0.0
        %583 = vmatpush1.msra.mxu0 0.0
        %584 = vmatprep.subr.mxu0 0.0
        %585 = vmatpush1.msra.mxu0 0.0
        %586 = vmatprep.subr.mxu0 0.0
        %587 = vmatpush1.msra.mxu0 0.0
        %588 = vmatprep.subr.mxu0 0.0
        %589 = vmatpush1.msra.mxu0 0.0
        %590 = vmatprep.subr.mxu0 0.0
        %591 = vmatpush1.msra.mxu0 0.0
        %592 = vmatprep.subr.mxu0 0.0
        %593 = vmatpush1.msra.mxu0 0.0
        %594 = vmatprep.subr.mxu0 0.0
        %595 = vmatpush1.msra.mxu0 0.0
        %596 = vmatprep.subr.mxu0 0.0
        %597 = vmatpush1.msra.mxu0 0.0
        %598 = vmatprep.subr.mxu0 0.0
        %599 = vmatpush1.msra.mxu0 0.0
        %600 = vmatprep.subr.mxu0 0.0
        %601 = vmatpush1.msra.mxu0 0.0
        %602 = vmatprep.subr.mxu0 0.0
        %603 = vmatpush1.msra.mxu0 0.0
        %604 = vmatprep.subr.mxu0 0.0
        %605 = vmatpush1.msra.mxu0 0.0
        %606 = vmatprep.subr.mxu0 0.0
        %607 = vmatpush1.msra.mxu0 0.0
        %608 = vmatprep.subr.mxu0 0.0
        %609 = vmatpush1.msra.mxu0 0.0
        %610 = vmatprep.subr.mxu0 0.0
        %611 = vmatpush1.msra.mxu0 0.0
        %612 = vmatprep.subr.mxu0 0.0
        %613 = vmatpush1.msra.mxu0 0.0
        %614 = vmatprep.subr.mxu0 0.0
        %615 = vmatpush1.msra.mxu0 0.0
        %616 = vmatprep.subr.mxu0 0.0
        %617 = vmatpush1.msra.mxu0 0.0
        %618 = vmatprep.subr.mxu0 0.0
        %619 = vmatpush1.msra.mxu0 0.0
        %620 = vmatprep.subr.mxu0 0.0
        %621 = vmatpush1.msra.mxu0 0.0
        %622 = vmatprep.subr.mxu0 0.0
        %623 = vmatpush1.msra.mxu0 0.0
        %624 = vmatprep.mubr.f32.mxu0 0.0
        %625 = vmatmul.mubr.f32.gmra.mrb[0].mxu0 %v558
        %v626 = vpop.f32.mrb[0].mxu0
        %v627 = vadd.f32 %v555, %v626
        %v628 = vpop.f32.mrb[0].mxu0
        %629 = vdwg.mxu0
        %v630 = vld [vmem:[%s395] sm:$0xff]
        %631 = vrot.lane.b32.xlu0 %v451, 64
        %v632 = vpop.permute.xlu0 %631
        %633 = vrot.lane.b32.xlu0 %v452, 64
        %v634 = vpop.permute.xlu0 %633
        %635 = vrot.lane.b32.xlu0 %v453, 64
        %v636 = vpop.permute.xlu0 %635
        %637 = vrot.lane.b32.xlu0 %v454, 64
        %v638 = vpop.permute.xlu0 %637
        %643 = vrot.lane.b32.xlu0 %v461, 64
        %v644 = vpop.permute.xlu0 %643
        %v647 = vsel %vm463, %v630, 0
        %649 = vmatprep.subr.mxu0 0.0
        %650 = vmatpush1.msra.mxu0 %v632
        %651 = vmatprep.subr.mxu0 0.0
        %652 = vmatpush1.msra.mxu0 %v634
        %653 = vmatprep.subr.mxu0 0.0
        %654 = vmatpush1.msra.mxu0 %v636
        %655 = vmatprep.subr.mxu0 0.0
        %656 = vmatpush1.msra.mxu0 %v638
        %657 = vmatprep.subr.mxu0 0.0
        %658 = vmatpush1.msra.mxu0 0.0
        %659 = vmatprep.subr.mxu0 0.0
        %660 = vmatpush1.msra.mxu0 0.0
        %661 = vmatprep.subr.mxu0 0.0
        %662 = vmatpush1.msra.mxu0 0.0
        %663 = vmatprep.subr.mxu0 0.0
        %664 = vmatpush1.msra.mxu0 0.0
        %665 = vmatprep.subr.mxu0 0.0
        %666 = vmatpush1.msra.mxu0 0.0
        %667 = vmatprep.subr.mxu0 0.0
        %668 = vmatpush1.msra.mxu0 0.0
        %669 = vmatprep.subr.mxu0 0.0
        %670 = vmatpush1.msra.mxu0 0.0
        %671 = vmatprep.subr.mxu0 0.0
        %672 = vmatpush1.msra.mxu0 0.0
        %673 = vmatprep.subr.mxu0 0.0
        %674 = vmatpush1.msra.mxu0 0.0
        %675 = vmatprep.subr.mxu0 0.0
        %676 = vmatpush1.msra.mxu0 0.0
        %677 = vmatprep.subr.mxu0 0.0
        %678 = vmatpush1.msra.mxu0 0.0
        %679 = vmatprep.subr.mxu0 0.0
        %680 = vmatpush1.msra.mxu0 0.0
        %681 = vmatprep.subr.mxu0 0.0
        %682 = vmatpush1.msra.mxu0 0.0
        %683 = vmatprep.subr.mxu0 0.0
        %684 = vmatpush1.msra.mxu0 0.0
        %685 = vmatprep.subr.mxu0 0.0
        %686 = vmatpush1.msra.mxu0 0.0
        %687 = vmatprep.subr.mxu0 0.0
        %688 = vmatpush1.msra.mxu0 0.0
        %689 = vmatprep.subr.mxu0 0.0
        %690 = vmatpush1.msra.mxu0 0.0
        %691 = vmatprep.subr.mxu0 0.0
        %692 = vmatpush1.msra.mxu0 0.0
        %693 = vmatprep.subr.mxu0 0.0
        %694 = vmatpush1.msra.mxu0 0.0
        %695 = vmatprep.subr.mxu0 0.0
        %696 = vmatpush1.msra.mxu0 0.0
        %697 = vmatprep.subr.mxu0 0.0
        %698 = vmatpush1.msra.mxu0 0.0
        %699 = vmatprep.subr.mxu0 0.0
        %700 = vmatpush1.msra.mxu0 0.0
        %701 = vmatprep.subr.mxu0 0.0
        %702 = vmatpush1.msra.mxu0 0.0
        %703 = vmatprep.subr.mxu0 0.0
        %704 = vmatpush1.msra.mxu0 0.0
        %705 = vmatprep.subr.mxu0 0.0
        %706 = vmatpush1.msra.mxu0 0.0
        %707 = vmatprep.subr.mxu0 0.0
        %708 = vmatpush1.msra.mxu0 0.0
        %709 = vmatprep.subr.mxu0 0.0
        %710 = vmatpush1.msra.mxu0 0.0
        %711 = vmatprep.subr.mxu0 0.0
        %712 = vmatpush1.msra.mxu0 0.0
        %713 = vmatprep.mubr.f32.mxu0 0.0
        %714 = vmatmul.mubr.f32.gmra.mrb[0].mxu0 %v647
        %v715 = vpop.f32.mrb[0].mxu0
        %v716 = vadd.f32 %v644, %v715
        %v717 = vpop.f32.mrb[0].mxu0
        %718 = vdwg.mxu0
        %v719 = vmul.f32 %v534, 0.35355338
        %vm720 = vcmask 64512
        %v722 = vsel %vm720, %v719, 0
        %v725 = vsel %vm720, %v627, 0
        %727 = vmatprep.subr.mxu0 0.0
        %728 = vmatpush1.xpose.msra.mxu0 %v725
        %729 = vmatprep.subr.mxu0 0.0
        %730 = vmatpush1.xpose.msra.mxu0 0.0
        %731 = vmatprep.subr.mxu0 0.0
        %732 = vmatpush1.xpose.msra.mxu0 0.0
        %733 = vmatprep.subr.mxu0 0.0
        %734 = vmatpush1.xpose.msra.mxu0 0.0
        %735 = vmatprep.subr.mxu0 0.0
        %736 = vmatpush1.xpose.msra.mxu0 0.0
        %737 = vmatprep.subr.mxu0 0.0
        %738 = vmatpush1.xpose.msra.mxu0 0.0
        %739 = vmatprep.subr.mxu0 0.0
        %740 = vmatpush1.xpose.msra.mxu0 0.0
        %741 = vmatprep.subr.mxu0 0.0
        %742 = vmatpush1.xpose.msra.mxu0 0.0
        %743 = vmatprep.subr.mxu0 0.0
        %744 = vmatpush1.xpose.msra.mxu0 0.0
        %745 = vmatprep.subr.mxu0 0.0
        %746 = vmatpush1.xpose.msra.mxu0 0.0
        %747 = vmatprep.subr.mxu0 0.0
        %748 = vmatpush1.xpose.msra.mxu0 0.0
        %749 = vmatprep.subr.mxu0 0.0
        %750 = vmatpush1.xpose.msra.mxu0 0.0
        %751 = vmatprep.subr.mxu0 0.0
        %752 = vmatpush1.xpose.msra.mxu0 0.0
        %753 = vmatprep.subr.mxu0 0.0
        %754 = vmatpush1.xpose.msra.mxu0 0.0
        %755 = vmatprep.subr.mxu0 0.0
        %756 = vmatpush1.xpose.msra.mxu0 0.0
        %757 = vmatprep.subr.mxu0 0.0
        %758 = vmatpush1.xpose.msra.mxu0 0.0
        %759 = vmatprep.subr.mxu0 0.0
        %760 = vmatpush1.xpose.msra.mxu0 0.0
        %761 = vmatprep.subr.mxu0 0.0
        %762 = vmatpush1.xpose.msra.mxu0 0.0
        %763 = vmatprep.subr.mxu0 0.0
        %764 = vmatpush1.xpose.msra.mxu0 0.0
        %765 = vmatprep.subr.mxu0 0.0
        %766 = vmatpush1.xpose.msra.mxu0 0.0
        %767 = vmatprep.subr.mxu0 0.0
        %768 = vmatpush1.xpose.msra.mxu0 0.0
        %769 = vmatprep.subr.mxu0 0.0
        %770 = vmatpush1.xpose.msra.mxu0 0.0
        %771 = vmatprep.subr.mxu0 0.0
        %772 = vmatpush1.xpose.msra.mxu0 0.0
        %773 = vmatprep.subr.mxu0 0.0
        %774 = vmatpush1.xpose.msra.mxu0 0.0
        %775 = vmatprep.subr.mxu0 0.0
        %776 = vmatpush1.xpose.msra.mxu0 0.0
        %777 = vmatprep.subr.mxu0 0.0
        %778 = vmatpush1.xpose.msra.mxu0 0.0
        %779 = vmatprep.subr.mxu0 0.0
        %780 = vmatpush1.xpose.msra.mxu0 0.0
        %781 = vmatprep.subr.mxu0 0.0
        %782 = vmatpush1.xpose.msra.mxu0 0.0
        %783 = vmatprep.subr.mxu0 0.0
        %784 = vmatpush1.xpose.msra.mxu0 0.0
        %785 = vmatprep.subr.mxu0 0.0
        %786 = vmatpush1.xpose.msra.mxu0 0.0
        %787 = vmatprep.subr.mxu0 0.0
        %788 = vmatpush1.xpose.msra.mxu0 0.0
        %789 = vmatprep.subr.mxu0 0.0
        %790 = vmatpush1.xpose.msra.mxu0 0.0
        %791 = vmatprep.mubr.f32.mxu0 0.0
        %792 = vmatmul.mubr.f32.gmra.mrb[0].mxu0 %v722
        %v793 = vpop.f32.mrb[0].mxu0
        %v794 = vadd.f32 0.0, %v793
        %v795 = vpop.f32.mrb[0].mxu0
        %796 = vdwg.mxu0
        %v797 = vsel %vm720, %v794, -inf
        %798 = vmax.xlane.f32.xlu0 %v797
        %v799 = vpop.xlane.xlu0 %798
        %v800 = vsub.f32 %v794, %v799
        %v801 = vmul.f32 %v800, 1.442695
        %v802 = vpow.pop %v801
        %v803 = vsel %vm720, %v802, 0.0
        %804 = vadd.xlane.f32.xlu0 %v803
        %v805 = vpop.xlane.xlu0 %804
        %v806 = vrcp.pop %v805
        %v807 = vmul.f32 %v802, %v806
        %808 = vst.msk [vmem:[%s450] sm:$0xff] %vm720, %v807
        %v810 = vsel %vm720, %v807, 0
        %812 = vmatprep.subr.mxu0 0.0
        %813 = vmatpush1.msra.mxu0 %v716
        %814 = vmatprep.subr.mxu0 0.0
        %815 = vmatpush1.msra.mxu0 0.0
        %816 = vmatprep.subr.mxu0 0.0
        %817 = vmatpush1.msra.mxu0 0.0
        %818 = vmatprep.subr.mxu0 0.0
        %819 = vmatpush1.msra.mxu0 0.0
        %820 = vmatprep.subr.mxu0 0.0
        %821 = vmatpush1.msra.mxu0 0.0
        %822 = vmatprep.subr.mxu0 0.0
        %823 = vmatpush1.msra.mxu0 0.0
        %824 = vmatprep.subr.mxu0 0.0
        %825 = vmatpush1.msra.mxu0 0.0
        %826 = vmatprep.subr.mxu0 0.0
        %827 = vmatpush1.msra.mxu0 0.0
        %828 = vmatprep.subr.mxu0 0.0
        %829 = vmatpush1.msra.mxu0 0.0
        %830 = vmatprep.subr.mxu0 0.0
        %831 = vmatpush1.msra.mxu0 0.0
        %832 = vmatprep.subr.mxu0 0.0
        %833 = vmatpush1.msra.mxu0 0.0
        %834 = vmatprep.subr.mxu0 0.0
        %835 = vmatpush1.msra.mxu0 0.0
        %836 = vmatprep.subr.mxu0 0.0
        %837 = vmatpush1.msra.mxu0 0.0
        %838 = vmatprep.subr.mxu0 0.0
        %839 = vmatpush1.msra.mxu0 0.0
        %840 = vmatprep.subr.mxu0 0.0
        %841 = vmatpush1.msra.mxu0 0.0
        %842 = vmatprep.subr.mxu0 0.0
        %843 = vmatpush1.msra.mxu0 0.0
        %844 = vmatprep.subr.mxu0 0.0
        %845 = vmatpush1.msra.mxu0 0.0
        %846 = vmatprep.subr.mxu0 0.0
        %847 = vmatpush1.msra.mxu0 0.0
        %848 = vmatprep.subr.mxu0 0.0
        %849 = vmatpush1.msra.mxu0 0.0
        %850 = vmatprep.subr.mxu0 0.0
        %851 = vmatpush1.msra.mxu0 0.0
        %852 = vmatprep.subr.mxu0 0.0
        %853 = vmatpush1.msra.mxu0 0.0
        %854 = vmatprep.subr.mxu0 0.0
        %855 = vmatpush1.msra.mxu0 0.0
        %856 = vmatprep.subr.mxu0 0.0
        %857 = vmatpush1.msra.mxu0 0.0
        %858 = vmatprep.subr.mxu0 0.0
        %859 = vmatpush1.msra.mxu0 0.0
        %860 = vmatprep.subr.mxu0 0.0
        %861 = vmatpush1.msra.mxu0 0.0
        %862 = vmatprep.subr.mxu0 0.0
        %863 = vmatpush1.msra.mxu0 0.0
        %864 = vmatprep.subr.mxu0 0.0
        %865 = vmatpush1.msra.mxu0 0.0
        %866 = vmatprep.subr.mxu0 0.0
        %867 = vmatpush1.msra.mxu0 0.0
        %868 = vmatprep.subr.mxu0 0.0
        %869 = vmatpush1.msra.mxu0 0.0
        %870 = vmatprep.subr.mxu0 0.0
        %871 = vmatpush1.msra.mxu0 0.0
        %872 = vmatprep.subr.mxu0 0.0
        %873 = vmatpush1.msra.mxu0 0.0
        %874 = vmatprep.subr.mxu0 0.0
        %875 = vmatpush1.msra.mxu0 0.0
        %876 = vmatprep.mubr.f32.mxu0 0.0
        %877 = vmatmul.mubr.f32.gmra.mrb[0].mxu0 %v810
        %v878 = vpop.f32.mrb[0].mxu0
        %v879 = vadd.f32 0.0, %v878
        %v880 = vpop.f32.mrb[0].mxu0
        %881 = vdwg.mxu0
        %882 = vst.msk [vmem:[#allocation2] sm:$0xff] %vm720, %v879
        %883 = vrot.lane.b32.xlu0 %v719, 120
        %v884 = vpop.permute.xlu0 %883
        %885 = vrot.lane.b32.xlu0 %v627, 120
        %v886 = vpop.permute.xlu0 %885
        %v887 = vsel %vm720, %v884, 0
        %v889 = vsel %vm720, %v886, 0
        %891 = vmatprep.subr.mxu0 0.0
        %892 = vmatpush1.xpose.msra.mxu0 %v889
        %893 = vmatprep.subr.mxu0 0.0
        %894 = vmatpush1.xpose.msra.mxu0 0.0
        %895 = vmatprep.subr.mxu0 0.0
        %896 = vmatpush1.xpose.msra.mxu0 0.0
        %897 = vmatprep.subr.mxu0 0.0
        %898 = vmatpush1.xpose.msra.mxu0 0.0
        %899 = vmatprep.subr.mxu0 0.0
        %900 = vmatpush1.xpose.msra.mxu0 0.0
        %901 = vmatprep.subr.mxu0 0.0
        %902 = vmatpush1.xpose.msra.mxu0 0.0
        %903 = vmatprep.subr.mxu0 0.0
        %904 = vmatpush1.xpose.msra.mxu0 0.0
        %905 = vmatprep.subr.mxu0 0.0
        %906 = vmatpush1.xpose.msra.mxu0 0.0
        %907 = vmatprep.subr.mxu0 0.0
        %908 = vmatpush1.xpose.msra.mxu0 0.0
        %909 = vmatprep.subr.mxu0 0.0
        %910 = vmatpush1.xpose.msra.mxu0 0.0
        %911 = vmatprep.subr.mxu0 0.0
        %912 = vmatpush1.xpose.msra.mxu0 0.0
        %913 = vmatprep.subr.mxu0 0.0
        %914 = vmatpush1.xpose.msra.mxu0 0.0
        %915 = vmatprep.subr.mxu0 0.0
        %916 = vmatpush1.xpose.msra.mxu0 0.0
        %917 = vmatprep.subr.mxu0 0.0
        %918 = vmatpush1.xpose.msra.mxu0 0.0
        %919 = vmatprep.subr.mxu0 0.0
        %920 = vmatpush1.xpose.msra.mxu0 0.0
        %921 = vmatprep.subr.mxu0 0.0
        %922 = vmatpush1.xpose.msra.mxu0 0.0
        %923 = vmatprep.subr.mxu0 0.0
        %924 = vmatpush1.xpose.msra.mxu0 0.0
        %925 = vmatprep.subr.mxu0 0.0
        %926 = vmatpush1.xpose.msra.mxu0 0.0
        %927 = vmatprep.subr.mxu0 0.0
        %928 = vmatpush1.xpose.msra.mxu0 0.0
        %929 = vmatprep.subr.mxu0 0.0
        %930 = vmatpush1.xpose.msra.mxu0 0.0
        %931 = vmatprep.subr.mxu0 0.0
        %932 = vmatpush1.xpose.msra.mxu0 0.0
        %933 = vmatprep.subr.mxu0 0.0
        %934 = vmatpush1.xpose.msra.mxu0 0.0
        %935 = vmatprep.subr.mxu0 0.0
        %936 = vmatpush1.xpose.msra.mxu0 0.0
        %937 = vmatprep.subr.mxu0 0.0
        %938 = vmatpush1.xpose.msra.mxu0 0.0
        %939 = vmatprep.subr.mxu0 0.0
        %940 = vmatpush1.xpose.msra.mxu0 0.0
        %941 = vmatprep.subr.mxu0 0.0
        %942 = vmatpush1.xpose.msra.mxu0 0.0
        %943 = vmatprep.subr.mxu0 0.0
        %944 = vmatpush1.xpose.msra.mxu0 0.0
        %945 = vmatprep.subr.mxu0 0.0
        %946 = vmatpush1.xpose.msra.mxu0 0.0
        %947 = vmatprep.subr.mxu0 0.0
        %948 = vmatpush1.xpose.msra.mxu0 0.0
        %949 = vmatprep.subr.mxu0 0.0
        %950 = vmatpush1.xpose.msra.mxu0 0.0
        %951 = vmatprep.subr.mxu0 0.0
        %952 = vmatpush1.xpose.msra.mxu0 0.0
        %953 = vmatprep.subr.mxu0 0.0
        %954 = vmatpush1.xpose.msra.mxu0 0.0
        %955 = vmatprep.mubr.f32.mxu0 0.0
        %956 = vmatmul.mubr.f32.gmra.mrb[0].mxu0 %v887
        %v957 = vpop.f32.mrb[0].mxu0
        %v958 = vadd.f32 0.0, %v957
        %v959 = vpop.f32.mrb[0].mxu0
        %960 = vdwg.mxu0
        %v961 = vsel %vm720, %v958, -inf
        %962 = vmax.xlane.f32.xlu0 %v961
        %v963 = vpop.xlane.xlu0 %962
        %v964 = vsub.f32 %v958, %v963
        %v965 = vmul.f32 %v964, 1.442695
        %v966 = vpow.pop %v965
        %v967 = vsel %vm720, %v966, 0.0
        %968 = vadd.xlane.f32.xlu0 %v967
        %v969 = vpop.xlane.xlu0 %968
        %v970 = vrcp.pop %v969
        %v971 = vmul.f32 %v966, %v970
        %s972 = scalar_lea.vmem %s450, 8 [#allocation13]
        %973 = vst.msk [vmem:[%s972] sm:$0xff] %vm720, %v971
        %975 = vrot.lane.b32.xlu0 %v716, 120
        %v976 = vpop.permute.xlu0 %975
        %v979 = vsel %vm720, %v971, 0
        %981 = vmatprep.subr.mxu0 0.0
        %982 = vmatpush1.msra.mxu0 %v976
        %983 = vmatprep.subr.mxu0 0.0
        %984 = vmatpush1.msra.mxu0 0.0
        %985 = vmatprep.subr.mxu0 0.0
        %986 = vmatpush1.msra.mxu0 0.0
        %987 = vmatprep.subr.mxu0 0.0
        %988 = vmatpush1.msra.mxu0 0.0
        %989 = vmatprep.subr.mxu0 0.0
        %990 = vmatpush1.msra.mxu0 0.0
        %991 = vmatprep.subr.mxu0 0.0
        %992 = vmatpush1.msra.mxu0 0.0
        %993 = vmatprep.subr.mxu0 0.0
        %994 = vmatpush1.msra.mxu0 0.0
        %995 = vmatprep.subr.mxu0 0.0
        %996 = vmatpush1.msra.mxu0 0.0
        %997 = vmatprep.subr.mxu0 0.0
        %998 = vmatpush1.msra.mxu0 0.0
        %999 = vmatprep.subr.mxu0 0.0
        %1000 = vmatpush1.msra.mxu0 0.0
        %1001 = vmatprep.subr.mxu0 0.0
        %1002 = vmatpush1.msra.mxu0 0.0
        %1003 = vmatprep.subr.mxu0 0.0
        %1004 = vmatpush1.msra.mxu0 0.0
        %1005 = vmatprep.subr.mxu0 0.0
        %1006 = vmatpush1.msra.mxu0 0.0
        %1007 = vmatprep.subr.mxu0 0.0
        %1008 = vmatpush1.msra.mxu0 0.0
        %1009 = vmatprep.subr.mxu0 0.0
        %1010 = vmatpush1.msra.mxu0 0.0
        %1011 = vmatprep.subr.mxu0 0.0
        %1012 = vmatpush1.msra.mxu0 0.0
        %1013 = vmatprep.subr.mxu0 0.0
        %1014 = vmatpush1.msra.mxu0 0.0
        %1015 = vmatprep.subr.mxu0 0.0
        %1016 = vmatpush1.msra.mxu0 0.0
        %1017 = vmatprep.subr.mxu0 0.0
        %1018 = vmatpush1.msra.mxu0 0.0
        %1019 = vmatprep.subr.mxu0 0.0
        %1020 = vmatpush1.msra.mxu0 0.0
        %1021 = vmatprep.subr.mxu0 0.0
        %1022 = vmatpush1.msra.mxu0 0.0
        %1023 = vmatprep.subr.mxu0 0.0
        %1024 = vmatpush1.msra.mxu0 0.0
        %1025 = vmatprep.subr.mxu0 0.0
        %1026 = vmatpush1.msra.mxu0 0.0
        %1027 = vmatprep.subr.mxu0 0.0
        %1028 = vmatpush1.msra.mxu0 0.0
        %1029 = vmatprep.subr.mxu0 0.0
        %1030 = vmatpush1.msra.mxu0 0.0
        %1031 = vmatprep.subr.mxu0 0.0
        %1032 = vmatpush1.msra.mxu0 0.0
        %1033 = vmatprep.subr.mxu0 0.0
        %1034 = vmatpush1.msra.mxu0 0.0
        %1035 = vmatprep.subr.mxu0 0.0
        %1036 = vmatpush1.msra.mxu0 0.0
        %1037 = vmatprep.subr.mxu0 0.0
        %1038 = vmatpush1.msra.mxu0 0.0
        %1039 = vmatprep.subr.mxu0 0.0
        %1040 = vmatpush1.msra.mxu0 0.0
        %1041 = vmatprep.subr.mxu0 0.0
        %1042 = vmatpush1.msra.mxu0 0.0
        %1043 = vmatprep.subr.mxu0 0.0
        %1044 = vmatpush1.msra.mxu0 0.0
        %1045 = vmatprep.mubr.f32.mxu0 0.0
        %1046 = vmatmul.mubr.f32.gmra.mrb[0].mxu0 %v979
        %v1047 = vpop.f32.mrb[0].mxu0
        %v1048 = vadd.f32 0.0, %v1047
        %v1049 = vpop.f32.mrb[0].mxu0
        %1050 = vdwg.mxu0
        %1052 = vrot.lane.b32.xlu0 %v1048, 8
        %v1053 = vpop.permute.xlu0 %1052
        %vm1055 = vcmask 130112
        %1056 = vst.msk [vmem:[#allocation2] sm:$0xff] %vm1055, %v1053
        %1057 = vrot.lane.b32.xlu0 %v719, 112
        %v1058 = vpop.permute.xlu0 %1057
        %1059 = vrot.lane.b32.xlu0 %v627, 112
        %v1060 = vpop.permute.xlu0 %1059
        %v1061 = vsel %vm720, %v1058, 0
        %v1063 = vsel %vm720, %v1060, 0
        %1065 = vmatprep.subr.mxu0 0.0
        %1066 = vmatpush1.xpose.msra.mxu0 %v1063
        %1067 = vmatprep.subr.mxu0 0.0
        %1068 = vmatpush1.xpose.msra.mxu0 0.0
        %1069 = vmatprep.subr.mxu0 0.0
        %1070 = vmatpush1.xpose.msra.mxu0 0.0
        %1071 = vmatprep.subr.mxu0 0.0
        %1072 = vmatpush1.xpose.msra.mxu0 0.0
        %1073 = vmatprep.subr.mxu0 0.0
        %1074 = vmatpush1.xpose.msra.mxu0 0.0
        %1075 = vmatprep.subr.mxu0 0.0
        %1076 = vmatpush1.xpose.msra.mxu0 0.0
        %1077 = vmatprep.subr.mxu0 0.0
        %1078 = vmatpush1.xpose.msra.mxu0 0.0
        %1079 = vmatprep.subr.mxu0 0.0
        %1080 = vmatpush1.xpose.msra.mxu0 0.0
        %1081 = vmatprep.subr.mxu0 0.0
        %1082 = vmatpush1.xpose.msra.mxu0 0.0
        %1083 = vmatprep.subr.mxu0 0.0
        %1084 = vmatpush1.xpose.msra.mxu0 0.0
        %1085 = vmatprep.subr.mxu0 0.0
        %1086 = vmatpush1.xpose.msra.mxu0 0.0
        %1087 = vmatprep.subr.mxu0 0.0
        %1088 = vmatpush1.xpose.msra.mxu0 0.0
        %1089 = vmatprep.subr.mxu0 0.0
        %1090 = vmatpush1.xpose.msra.mxu0 0.0
        %1091 = vmatprep.subr.mxu0 0.0
        %1092 = vmatpush1.xpose.msra.mxu0 0.0
        %1093 = vmatprep.subr.mxu0 0.0
        %1094 = vmatpush1.xpose.msra.mxu0 0.0
        %1095 = vmatprep.subr.mxu0 0.0
        %1096 = vmatpush1.xpose.msra.mxu0 0.0
        %1097 = vmatprep.subr.mxu0 0.0
        %1098 = vmatpush1.xpose.msra.mxu0 0.0
        %1099 = vmatprep.subr.mxu0 0.0
        %1100 = vmatpush1.xpose.msra.mxu0 0.0
        %1101 = vmatprep.subr.mxu0 0.0
        %1102 = vmatpush1.xpose.msra.mxu0 0.0
        %1103 = vmatprep.subr.mxu0 0.0
        %1104 = vmatpush1.xpose.msra.mxu0 0.0
        %1105 = vmatprep.subr.mxu0 0.0
        %1106 = vmatpush1.xpose.msra.mxu0 0.0
        %1107 = vmatprep.subr.mxu0 0.0
        %1108 = vmatpush1.xpose.msra.mxu0 0.0
        %1109 = vmatprep.subr.mxu0 0.0
        %1110 = vmatpush1.xpose.msra.mxu0 0.0
        %1111 = vmatprep.subr.mxu0 0.0
        %1112 = vmatpush1.xpose.msra.mxu0 0.0
        %1113 = vmatprep.subr.mxu0 0.0
        %1114 = vmatpush1.xpose.msra.mxu0 0.0
        %1115 = vmatprep.subr.mxu0 0.0
        %1116 = vmatpush1.xpose.msra.mxu0 0.0
        %1117 = vmatprep.subr.mxu0 0.0
        %1118 = vmatpush1.xpose.msra.mxu0 0.0
        %1119 = vmatprep.subr.mxu0 0.0
        %1120 = vmatpush1.xpose.msra.mxu0 0.0
        %1121 = vmatprep.subr.mxu0 0.0
        %1122 = vmatpush1.xpose.msra.mxu0 0.0
        %1123 = vmatprep.subr.mxu0 0.0
        %1124 = vmatpush1.xpose.msra.mxu0 0.0
        %1125 = vmatprep.subr.mxu0 0.0
        %1126 = vmatpush1.xpose.msra.mxu0 0.0
        %1127 = vmatprep.subr.mxu0 0.0
        %1128 = vmatpush1.xpose.msra.mxu0 0.0
        %1129 = vmatprep.mubr.f32.mxu0 0.0
        %1130 = vmatmul.mubr.f32.gmra.mrb[0].mxu0 %v1061
        %v1131 = vpop.f32.mrb[0].mxu0
        %v1132 = vadd.f32 0.0, %v1131
        %v1133 = vpop.f32.mrb[0].mxu0
        %1134 = vdwg.mxu0
        %v1135 = vsel %vm720, %v1132, -inf
        %1136 = vmax.xlane.f32.xlu0 %v1135
        %v1137 = vpop.xlane.xlu0 %1136
        %v1138 = vsub.f32 %v1132, %v1137
        %v1139 = vmul.f32 %v1138, 1.442695
        %v1140 = vpow.pop %v1139
        %v1141 = vsel %vm720, %v1140, 0.0
        %1142 = vadd.xlane.f32.xlu0 %v1141
        %v1143 = vpop.xlane.xlu0 %1142
        %v1144 = vrcp.pop %v1143
        %v1145 = vmul.f32 %v1140, %v1144
        %s1146 = scalar_lea.vmem %s450, 16 [#allocation13]
        %1147 = vst.msk [vmem:[%s1146] sm:$0xff] %vm720, %v1145
        %1148 = vrot.lane.b32.xlu0 %v716, 112
        %v1149 = vpop.permute.xlu0 %1148
        %v1152 = vsel %vm720, %v1145, 0
        %1154 = vmatprep.subr.mxu0 0.0
        %1155 = vmatpush1.msra.mxu0 %v1149
        %1156 = vmatprep.subr.mxu0 0.0
        %1157 = vmatpush1.msra.mxu0 0.0
        %1158 = vmatprep.subr.mxu0 0.0
        %1159 = vmatpush1.msra.mxu0 0.0
        %1160 = vmatprep.subr.mxu0 0.0
        %1161 = vmatpush1.msra.mxu0 0.0
        %1162 = vmatprep.subr.mxu0 0.0
        %1163 = vmatpush1.msra.mxu0 0.0
        %1164 = vmatprep.subr.mxu0 0.0
        %1165 = vmatpush1.msra.mxu0 0.0
        %1166 = vmatprep.subr.mxu0 0.0
        %1167 = vmatpush1.msra.mxu0 0.0
        %1168 = vmatprep.subr.mxu0 0.0
        %1169 = vmatpush1.msra.mxu0 0.0
        %1170 = vmatprep.subr.mxu0 0.0
        %1171 = vmatpush1.msra.mxu0 0.0
        %1172 = vmatprep.subr.mxu0 0.0
        %1173 = vmatpush1.msra.mxu0 0.0
        %1174 = vmatprep.subr.mxu0 0.0
        %1175 = vmatpush1.msra.mxu0 0.0
        %1176 = vmatprep.subr.mxu0 0.0
        %1177 = vmatpush1.msra.mxu0 0.0
        %1178 = vmatprep.subr.mxu0 0.0
        %1179 = vmatpush1.msra.mxu0 0.0
        %1180 = vmatprep.subr.mxu0 0.0
        %1181 = vmatpush1.msra.mxu0 0.0
        %1182 = vmatprep.subr.mxu0 0.0
        %1183 = vmatpush1.msra.mxu0 0.0
        %1184 = vmatprep.subr.mxu0 0.0
        %1185 = vmatpush1.msra.mxu0 0.0
        %1186 = vmatprep.subr.mxu0 0.0
        %1187 = vmatpush1.msra.mxu0 0.0
        %1188 = vmatprep.subr.mxu0 0.0
        %1189 = vmatpush1.msra.mxu0 0.0
        %1190 = vmatprep.subr.mxu0 0.0
        %1191 = vmatpush1.msra.mxu0 0.0
        %1192 = vmatprep.subr.mxu0 0.0
        %1193 = vmatpush1.msra.mxu0 0.0
        %1194 = vmatprep.subr.mxu0 0.0
        %1195 = vmatpush1.msra.mxu0 0.0
        %1196 = vmatprep.subr.mxu0 0.0
        %1197 = vmatpush1.msra.mxu0 0.0
        %1198 = vmatprep.subr.mxu0 0.0
        %1199 = vmatpush1.msra.mxu0 0.0
        %1200 = vmatprep.subr.mxu0 0.0
        %1201 = vmatpush1.msra.mxu0 0.0
        %1202 = vmatprep.subr.mxu0 0.0
        %1203 = vmatpush1.msra.mxu0 0.0
        %1204 = vmatprep.subr.mxu0 0.0
        %1205 = vmatpush1.msra.mxu0 0.0
        %1206 = vmatprep.subr.mxu0 0.0
        %1207 = vmatpush1.msra.mxu0 0.0
        %1208 = vmatprep.subr.mxu0 0.0
        %1209 = vmatpush1.msra.mxu0 0.0
        %1210 = vmatprep.subr.mxu0 0.0
        %1211 = vmatpush1.msra.mxu0 0.0
        %1212 = vmatprep.subr.mxu0 0.0
        %1213 = vmatpush1.msra.mxu0 0.0
        %1214 = vmatprep.subr.mxu0 0.0
        %1215 = vmatpush1.msra.mxu0 0.0
        %1216 = vmatprep.subr.mxu0 0.0
        %1217 = vmatpush1.msra.mxu0 0.0
        %1218 = vmatprep.mubr.f32.mxu0 0.0
        %1219 = vmatmul.mubr.f32.gmra.mrb[0].mxu0 %v1152
        %v1220 = vpop.f32.mrb[0].mxu0
        %v1221 = vadd.f32 0.0, %v1220
        %v1222 = vpop.f32.mrb[0].mxu0
        %1223 = vdwg.mxu0
        %1225 = vrot.lane.b32.xlu0 %v1221, 16
        %v1226 = vpop.permute.xlu0 %1225
        %vm1228 = vcmask 195712
        %1229 = vst.msk [vmem:[#allocation2] sm:$0xff] %vm1228, %v1226
        %1230 = vrot.lane.b32.xlu0 %v719, 104
        %v1231 = vpop.permute.xlu0 %1230
        %1232 = vrot.lane.b32.xlu0 %v627, 104
        %v1233 = vpop.permute.xlu0 %1232
        %v1234 = vsel %vm720, %v1231, 0
        %v1236 = vsel %vm720, %v1233, 0
        %1238 = vmatprep.subr.mxu0 0.0
        %1239 = vmatpush1.xpose.msra.mxu0 %v1236
        %1240 = vmatprep.subr.mxu0 0.0
        %1241 = vmatpush1.xpose.msra.mxu0 0.0
        %1242 = vmatprep.subr.mxu0 0.0
        %1243 = vmatpush1.xpose.msra.mxu0 0.0
        %1244 = vmatprep.subr.mxu0 0.0
        %1245 = vmatpush1.xpose.msra.mxu0 0.0
        %1246 = vmatprep.subr.mxu0 0.0
        %1247 = vmatpush1.xpose.msra.mxu0 0.0
        %1248 = vmatprep.subr.mxu0 0.0
        %1249 = vmatpush1.xpose.msra.mxu0 0.0
        %1250 = vmatprep.subr.mxu0 0.0
        %1251 = vmatpush1.xpose.msra.mxu0 0.0
        %1252 = vmatprep.subr.mxu0 0.0
        %1253 = vmatpush1.xpose.msra.mxu0 0.0
        %1254 = vmatprep.subr.mxu0 0.0
        %1255 = vmatpush1.xpose.msra.mxu0 0.0
        %1256 = vmatprep.subr.mxu0 0.0
        %1257 = vmatpush1.xpose.msra.mxu0 0.0
        %1258 = vmatprep.subr.mxu0 0.0
        %1259 = vmatpush1.xpose.msra.mxu0 0.0
        %1260 = vmatprep.subr.mxu0 0.0
        %1261 = vmatpush1.xpose.msra.mxu0 0.0
        %1262 = vmatprep.subr.mxu0 0.0
        %1263 = vmatpush1.xpose.msra.mxu0 0.0
        %1264 = vmatprep.subr.mxu0 0.0
        %1265 = vmatpush1.xpose.msra.mxu0 0.0
        %1266 = vmatprep.subr.mxu0 0.0
        %1267 = vmatpush1.xpose.msra.mxu0 0.0
        %1268 = vmatprep.subr.mxu0 0.0
        %1269 = vmatpush1.xpose.msra.mxu0 0.0
        %1270 = vmatprep.subr.mxu0 0.0
        %1271 = vmatpush1.xpose.msra.mxu0 0.0
        %1272 = vmatprep.subr.mxu0 0.0
        %1273 = vmatpush1.xpose.msra.mxu0 0.0
        %1274 = vmatprep.subr.mxu0 0.0
        %1275 = vmatpush1.xpose.msra.mxu0 0.0
        %1276 = vmatprep.subr.mxu0 0.0
        %1277 = vmatpush1.xpose.msra.mxu0 0.0
        %1278 = vmatprep.subr.mxu0 0.0
        %1279 = vmatpush1.xpose.msra.mxu0 0.0
        %1280 = vmatprep.subr.mxu0 0.0
        %1281 = vmatpush1.xpose.msra.mxu0 0.0
        %1282 = vmatprep.subr.mxu0 0.0
        %1283 = vmatpush1.xpose.msra.mxu0 0.0
        %1284 = vmatprep.subr.mxu0 0.0
        %1285 = vmatpush1.xpose.msra.mxu0 0.0
        %1286 = vmatprep.subr.mxu0 0.0
        %1287 = vmatpush1.xpose.msra.mxu0 0.0
        %1288 = vmatprep.subr.mxu0 0.0
        %1289 = vmatpush1.xpose.msra.mxu0 0.0
        %1290 = vmatprep.subr.mxu0 0.0
        %1291 = vmatpush1.xpose.msra.mxu0 0.0
        %1292 = vmatprep.subr.mxu0 0.0
        %1293 = vmatpush1.xpose.msra.mxu0 0.0
        %1294 = vmatprep.subr.mxu0 0.0
        %1295 = vmatpush1.xpose.msra.mxu0 0.0
        %1296 = vmatprep.subr.mxu0 0.0
        %1297 = vmatpush1.xpose.msra.mxu0 0.0
        %1298 = vmatprep.subr.mxu0 0.0
        %1299 = vmatpush1.xpose.msra.mxu0 0.0
        %1300 = vmatprep.subr.mxu0 0.0
        %1301 = vmatpush1.xpose.msra.mxu0 0.0
        %1302 = vmatprep.mubr.f32.mxu0 0.0
        %1303 = vmatmul.mubr.f32.gmra.mrb[0].mxu0 %v1234
        %v1304 = vpop.f32.mrb[0].mxu0
        %v1305 = vadd.f32 0.0, %v1304
        %v1306 = vpop.f32.mrb[0].mxu0
        %1307 = vdwg.mxu0
        %v1308 = vsel %vm720, %v1305, -inf
        %1309 = vmax.xlane.f32.xlu0 %v1308
        %v1310 = vpop.xlane.xlu0 %1309
        %v1311 = vsub.f32 %v1305, %v1310
        %v1312 = vmul.f32 %v1311, 1.442695
        %v1313 = vpow.pop %v1312
        %v1314 = vsel %vm720, %v1313, 0.0
        %1315 = vadd.xlane.f32.xlu0 %v1314
        %v1316 = vpop.xlane.xlu0 %1315
        %v1317 = vrcp.pop %v1316
        %v1318 = vmul.f32 %v1313, %v1317
        %s1319 = scalar_lea.vmem %s450, 24 [#allocation13]
        %1320 = vst.msk [vmem:[%s1319] sm:$0xff] %vm720, %v1318
        %1321 = vrot.lane.b32.xlu0 %v716, 104
        %v1322 = vpop.permute.xlu0 %1321
        %v1325 = vsel %vm720, %v1318, 0
        %1327 = vmatprep.subr.mxu0 0.0
        %1328 = vmatpush1.msra.mxu0 %v1322
        %1329 = vmatprep.subr.mxu0 0.0
        %1330 = vmatpush1.msra.mxu0 0.0
        %1331 = vmatprep.subr.mxu0 0.0
        %1332 = vmatpush1.msra.mxu0 0.0
        %1333 = vmatprep.subr.mxu0 0.0
        %1334 = vmatpush1.msra.mxu0 0.0
        %1335 = vmatprep.subr.mxu0 0.0
        %1336 = vmatpush1.msra.mxu0 0.0
        %1337 = vmatprep.subr.mxu0 0.0
        %1338 = vmatpush1.msra.mxu0 0.0
        %1339 = vmatprep.subr.mxu0 0.0
        %1340 = vmatpush1.msra.mxu0 0.0
        %1341 = vmatprep.subr.mxu0 0.0
        %1342 = vmatpush1.msra.mxu0 0.0
        %1343 = vmatprep.subr.mxu0 0.0
        %1344 = vmatpush1.msra.mxu0 0.0
        %1345 = vmatprep.subr.mxu0 0.0
        %1346 = vmatpush1.msra.mxu0 0.0
        %1347 = vmatprep.subr.mxu0 0.0
        %1348 = vmatpush1.msra.mxu0 0.0
        %1349 = vmatprep.subr.mxu0 0.0
        %1350 = vmatpush1.msra.mxu0 0.0
        %1351 = vmatprep.subr.mxu0 0.0
        %1352 = vmatpush1.msra.mxu0 0.0
        %1353 = vmatprep.subr.mxu0 0.0
        %1354 = vmatpush1.msra.mxu0 0.0
        %1355 = vmatprep.subr.mxu0 0.0
        %1356 = vmatpush1.msra.mxu0 0.0
        %1357 = vmatprep.subr.mxu0 0.0
        %1358 = vmatpush1.msra.mxu0 0.0
        %1359 = vmatprep.subr.mxu0 0.0
        %1360 = vmatpush1.msra.mxu0 0.0
        %1361 = vmatprep.subr.mxu0 0.0
        %1362 = vmatpush1.msra.mxu0 0.0
        %1363 = vmatprep.subr.mxu0 0.0
        %1364 = vmatpush1.msra.mxu0 0.0
        %1365 = vmatprep.subr.mxu0 0.0
        %1366 = vmatpush1.msra.mxu0 0.0
        %1367 = vmatprep.subr.mxu0 0.0
        %1368 = vmatpush1.msra.mxu0 0.0
        %1369 = vmatprep.subr.mxu0 0.0
        %1370 = vmatpush1.msra.mxu0 0.0
        %1371 = vmatprep.subr.mxu0 0.0
        %1372 = vmatpush1.msra.mxu0 0.0
        %1373 = vmatprep.subr.mxu0 0.0
        %1374 = vmatpush1.msra.mxu0 0.0
        %1375 = vmatprep.subr.mxu0 0.0
        %1376 = vmatpush1.msra.mxu0 0.0
        %1377 = vmatprep.subr.mxu0 0.0
        %1378 = vmatpush1.msra.mxu0 0.0
        %1379 = vmatprep.subr.mxu0 0.0
        %1380 = vmatpush1.msra.mxu0 0.0
        %1381 = vmatprep.subr.mxu0 0.0
        %1382 = vmatpush1.msra.mxu0 0.0
        %1383 = vmatprep.subr.mxu0 0.0
        %1384 = vmatpush1.msra.mxu0 0.0
        %1385 = vmatprep.subr.mxu0 0.0
        %1386 = vmatpush1.msra.mxu0 0.0
        %1387 = vmatprep.subr.mxu0 0.0
        %1388 = vmatpush1.msra.mxu0 0.0
        %1389 = vmatprep.subr.mxu0 0.0
        %1390 = vmatpush1.msra.mxu0 0.0
        %1391 = vmatprep.mubr.f32.mxu0 0.0
        %1392 = vmatmul.mubr.f32.gmra.mrb[0].mxu0 %v1325
        %v1393 = vpop.f32.mrb[0].mxu0
        %v1394 = vadd.f32 0.0, %v1393
        %v1395 = vpop.f32.mrb[0].mxu0
        %1396 = vdwg.mxu0
        %1398 = vrot.lane.b32.xlu0 %v1394, 24
        %v1399 = vpop.permute.xlu0 %1398
        %vm1401 = vcmask 261312
        %1402 = vst.msk [vmem:[#allocation2] sm:$0xff] %vm1401, %v1399
        %v1403 = vld [vmem:[#allocation2] sm:$0xff]
        %v1404 = vld [vmem:[#allocation11] sm:$0xff]
        %v1405 = vld [vmem:[#allocation11 + $0x8] sm:$0xff]
        %v1406 = vld [vmem:[#allocation11 + $0x10] sm:$0xff]
        %v1407 = vld [vmem:[#allocation11 + $0x18] sm:$0xff]
        %v1408 = vld [vmem:[%s6] sm:$0x1]
        %v1410 = vlaneseq
        %v1411 = vshrl.u32 %v1410, 7
        %v1412 = vsub.s32 0, %v1411
        %v1413 = vrot.slane %v1408, %v1412
        %v1416 = vsel %vm463, %v1403, 0
        %1418 = vmatprep.subr.mxu0 0.0
        %1419 = vmatpush1.msra.mxu0 %v1404
        %1420 = vmatprep.subr.mxu0 0.0
        %1421 = vmatpush1.msra.mxu0 %v1405
        %1422 = vmatprep.subr.mxu0 0.0
        %1423 = vmatpush1.msra.mxu0 %v1406
        %1424 = vmatprep.subr.mxu0 0.0
        %1425 = vmatpush1.msra.mxu0 %v1407
        %1426 = vmatprep.subr.mxu0 0.0
        %1427 = vmatpush1.msra.mxu0 0.0
        %1428 = vmatprep.subr.mxu0 0.0
        %1429 = vmatpush1.msra.mxu0 0.0
        %1430 = vmatprep.subr.mxu0 0.0
        %1431 = vmatpush1.msra.mxu0 0.0
        %1432 = vmatprep.subr.mxu0 0.0
        %1433 = vmatpush1.msra.mxu0 0.0
        %1434 = vmatprep.subr.mxu0 0.0
        %1435 = vmatpush1.msra.mxu0 0.0
        %1436 = vmatprep.subr.mxu0 0.0
        %1437 = vmatpush1.msra.mxu0 0.0
        %1438 = vmatprep.subr.mxu0 0.0
        %1439 = vmatpush1.msra.mxu0 0.0
        %1440 = vmatprep.subr.mxu0 0.0
        %1441 = vmatpush1.msra.mxu0 0.0
        %1442 = vmatprep.subr.mxu0 0.0
        %1443 = vmatpush1.msra.mxu0 0.0
        %1444 = vmatprep.subr.mxu0 0.0
        %1445 = vmatpush1.msra.mxu0 0.0
        %1446 = vmatprep.subr.mxu0 0.0
        %1447 = vmatpush1.msra.mxu0 0.0
        %1448 = vmatprep.subr.mxu0 0.0
        %1449 = vmatpush1.msra.mxu0 0.0
        %1450 = vmatprep.subr.mxu0 0.0
        %1451 = vmatpush1.msra.mxu0 0.0
        %1452 = vmatprep.subr.mxu0 0.0
        %1453 = vmatpush1.msra.mxu0 0.0
        %1454 = vmatprep.subr.mxu0 0.0
        %1455 = vmatpush1.msra.mxu0 0.0
        %1456 = vmatprep.subr.mxu0 0.0
        %1457 = vmatpush1.msra.mxu0 0.0
        %1458 = vmatprep.subr.mxu0 0.0
        %1459 = vmatpush1.msra.mxu0 0.0
        %1460 = vmatprep.subr.mxu0 0.0
        %1461 = vmatpush1.msra.mxu0 0.0
        %1462 = vmatprep.subr.mxu0 0.0
        %1463 = vmatpush1.msra.mxu0 0.0
        %1464 = vmatprep.subr.mxu0 0.0
        %1465 = vmatpush1.msra.mxu0 0.0
        %1466 = vmatprep.subr.mxu0 0.0
        %1467 = vmatpush1.msra.mxu0 0.0
        %1468 = vmatprep.subr.mxu0 0.0
        %1469 = vmatpush1.msra.mxu0 0.0
        %1470 = vmatprep.subr.mxu0 0.0
        %1471 = vmatpush1.msra.mxu0 0.0
        %1472 = vmatprep.subr.mxu0 0.0
        %1473 = vmatpush1.msra.mxu0 0.0
        %1474 = vmatprep.subr.mxu0 0.0
        %1475 = vmatpush1.msra.mxu0 0.0
        %1476 = vmatprep.subr.mxu0 0.0
        %1477 = vmatpush1.msra.mxu0 0.0
        %1478 = vmatprep.subr.mxu0 0.0
        %1479 = vmatpush1.msra.mxu0 0.0
        %1480 = vmatprep.subr.mxu0 0.0
        %1481 = vmatpush1.msra.mxu0 0.0
        %1482 = vmatprep.mubr.f32.mxu0 0.0
        %1483 = vmatmul.mubr.f32.gmra.mrb[0].mxu0 %v1416
        %v1484 = vpop.f32.mrb[0].mxu0
        %v1485 = vadd.f32 %v1413, %v1484
        %v1486 = vpop.f32.mrb[0].mxu0
        %1487 = vdwg.mxu0
        %1488 = vst.msk [vmem:[%s443] sm:$0xff] %vm463, %v1485
        %s1489 = sand.u32 %s219, 1
        %s1490 = scalar_lea.sflag [#allocation5], %s1489
        %s1491 = sand.u32 %s219, 1
        %s1492 = smul.addr %s1491, 8
        %s1493 = scalar_lea.vmem [#allocation12], %s1492
        %s1494 = sand.u32 %s247, 1
        %s1495 = scalar_lea.sflag [#allocation14], %s1494
        %s1496 = sand.u32 %s247, 1
        %s1497 = smul.addr %s1496, 32
        %s1498 = scalar_lea.vmem [#allocation13], %s1497
        // Predicated region
        $region69: #{tpu_custom_call.1} parent=47 // pred_check
          %p1499 = pneg %p229
        $region70: #{tpu_custom_call.1} parent=47 // pred_check_branch
          %1501 = sbr.rel (%p1499) target = $region72
        $region71: #{tpu_custom_call.1} parent=47 // pred_region
          %s1503 = ssub.s32 128, 128
          %1504 = vsyncadd %s1490, %s1503
          %s1505 = sadd.s32 %s38, %s37
          %s1506 = smul.addr %s1505, 128
          %s1507 = scalar_lea.hbm %s7, %s1506
          %s1509 = sshll.u32 %s1493, 4
          %s1510 = int_to_ptr.vmem [resolvable:$true] %s1509
          %1512 = dma.vmem_to_hbm [thread:$0]  %s1510, 128, %s1507, %s1490
        $region72: #{tpu_custom_call.1} parent=47 // pred_fallthru
          _
        // Predicated region
        $region73: #{tpu_custom_call.1} parent=47 // pred_check
          %p1513 = pneg %p257
        $region74: #{tpu_custom_call.1} parent=47 // pred_check_branch
          %1515 = sbr.rel (%p1513) target = $region76
        $region75: #{tpu_custom_call.1} parent=47 // pred_region
          %s1517 = ssub.s32 512, 512
          %1518 = vsyncadd %s1495, %s1517
          %s1519 = smul.addr %s37, 4
          %s1520 = sadd.s32 %s38, %s1519
          %s1521 = smul.addr %s1520, 128
          %s1522 = scalar_lea.hbm %s8, %s1521
          %s1523 = sshll.u32 %s1498, 4
          %s1524 = int_to_ptr.vmem [resolvable:$true] %s1523
          %1529 = dma.vmem_to_hbm [thread:$0]  %s1524, 512, %s1522, %s1495, 128, 128, 8
        $region76: #{tpu_custom_call.1} parent=47 // pred_fallthru
          _
      $region48: #{tpu_custom_call.1} parent=5 // pred_fallthru
        _
      %p1530 = scmp.le.s32.totalorder 2, %s28
      // Predicated region
      $region77: #{tpu_custom_call.1} parent=5 // pred_check
        %p1531 = pneg %p1530
      $region78: #{tpu_custom_call.1} parent=5 // pred_check_branch
        %1533 = sbr.rel (%p1531) target = $region80
      $region79: #{tpu_custom_call.1} parent=5 // pred_region
        %s1534 = ssub.s32 %s28, 2
        // Predicated region
        $region81: #{tpu_custom_call.1} parent=79 // pred_check
          %p1535 = pneg %p235
        $region82: #{tpu_custom_call.1} parent=79 // pred_check_branch
          %1537 = sbr.rel (%p1535) target = $region84
        $region83: #{tpu_custom_call.1} parent=79 // pred_region
          %s1538 = sand.u32 %s220, 1
          %s1539 = scalar_lea.sflag [#allocation5], %s1538
          %s1540 = sand.u32 %s220, 1
          %s1541 = smul.addr %s1540, 8
          %s1542 = scalar_lea.vmem [#allocation12], %s1541
          %1543 = dma.done %s1539, 128
        $region84: #{tpu_custom_call.1} parent=79 // pred_fallthru
          _
        // Predicated region
        $region85: #{tpu_custom_call.1} parent=79 // pred_check
          %p1544 = pneg %p263
        $region86: #{tpu_custom_call.1} parent=79 // pred_check_branch
          %1546 = sbr.rel (%p1544) target = $region88
        $region87: #{tpu_custom_call.1} parent=79 // pred_region
          %s1547 = sand.u32 %s248, 1
          %s1548 = scalar_lea.sflag [#allocation14], %s1547
          %s1549 = sand.u32 %s248, 1
          %s1550 = smul.addr %s1549, 32
          %s1551 = scalar_lea.vmem [#allocation13], %s1550
          %1552 = dma.done %s1548, 512
        $region88: #{tpu_custom_call.1} parent=79 // pred_fallthru
          _
      $region80: #{tpu_custom_call.1} parent=5 // pred_fallthru
        _
    $region6: #{tpu_custom_call.1} parent=1 // loop_footer
      %s32 = sadd.s32 1, %s28
    $region7: #{tpu_custom_call.1} parent=1 // loop_footer_branch
      %27 = sbr.rel target = $region3
    $region8: #{tpu_custom_call.1} parent=1 // loop_exit
      _
    %1553 = vsyncpa [#allocation4], 1
    %s1554 = scalar_lea.sflag [#allocation4], 1
    %1555 = vsyncpa %s1554, 1
    %1556 = vsyncpa [#allocation7], 1
    %s1557 = scalar_lea.sflag [#allocation7], 1
    %1558 = vsyncpa %s1557, 1
    %1559 = vsyncpa [#allocation10], 1
    %1560 = vsyncpa [#allocation5], 1
    %s1561 = scalar_lea.sflag [#allocation5], 1
    %1562 = vsyncpa %s1561, 1
    %1563 = vsyncpa [#allocation14], 1
    %s1564 = scalar_lea.sflag [#allocation14], 1
    %1565 = vsyncpa %s1564, 1

</llo_original>
